<compile_context>
chip_gen: v7x
topology: tpu7x:2x2x1
jax: 0.10.0
libtpu: 0.0.40
codegen_flags: <defaults>
</compile_context>

<pallas_src>
import functools

import jax
import jax.numpy as jnp
import numpy as np
from jax import lax
from jax.experimental import pallas as pl
from jax.experimental.pallas import tpu as pltpu


def _layernorm(x, w, b, eps=1e-5):
    mu = jnp.mean(x, axis=-1, keepdims=True)
    var = jnp.mean(jnp.square(x - mu), axis=-1, keepdims=True)
    return (x - mu) * lax.rsqrt(var + eps) * w + b


def _rope(t, cos, sin_signed):
    # rot[2i] = t[2i+1], rot[2i+1] = t[2i]; the (-1, +1) pair sign is folded
    # into sin_signed, so two XLU lane rolls + a select replace the rotation
    # matmul.  Head boundaries are safe: even lanes take the next lane, odd
    # lanes the previous lane — always within the same RoPE pair.
    w = t.shape[1]
    lane = lax.broadcasted_iota(jnp.int32, t.shape, 1)
    roll_r = pltpu.roll(t, 1, 1)        # out[l] = t[l-1]
    roll_l = pltpu.roll(t, w - 1, 1)    # out[l] = t[l+1]
    rot = jnp.where(lane % 2 == 0, roll_l, roll_r)
    return t * cos + rot * sin_signed


def msr_kernel(xq_ref, xkv_ref, cosq_ref, sinq_ref, cosk_ref, sink_ref,
               pre_w_ref, pre_b_ref,
               wqg_ref, bqg_ref, wkv_ref, bkv_ref,
               wo_ref, bo_ref, nrm_w_ref, nrm_b_ref,
               o_ref,
               q_sc, gate_sc, acc_sc,
               *, num_heads, keys_dim, vals_dim):
    f32, bf16 = jnp.float32, jnp.bfloat16
    ki = pl.program_id(2)
    kd_w = num_heads * keys_dim          # q / k slab width (= D)

    # (A) q-tile setup — runs once per (batch, q-tile): the kv axis is
    #     innermost and the q-side blocks' index_maps ignore ki, so their
    #     DMAs are not re-issued across kv steps.
    @pl.when(ki == 0)
    def _():
        xq = _layernorm(xq_ref[...], pre_w_ref[...], pre_b_ref[...])
        qg = jnp.dot(xq.astype(bf16), wqg_ref[...],
                     preferred_element_type=f32) + bqg_ref[...]     # [tq, 3D]
        q_sc[...] = _rope(qg[:, :kd_w], cosq_ref[...],
                          sinq_ref[...]).astype(bf16)               # [tq, H*KD]
        gate_sc[...] = jax.nn.silu(qg[:, kd_w:])                    # [tq, H*VD]
        acc_sc[...] = jnp.zeros_like(acc_sc)

    # (B) kv step: LN + fused k|v projection of this kv-tile (k-scaling folded
    #     into the weight), RoPE(k), then per-head flash-style accumulation
    #     q @ k^T @ v into the f32 VMEM accumulator.  bf16 casts are one full
    #     slab cast each (hoisted out of the per-head loop).
    xkv = _layernorm(xkv_ref[...], pre_w_ref[...], pre_b_ref[...])
    kv = jnp.dot(xkv.astype(bf16), wkv_ref[...],
                 preferred_element_type=f32) + bkv_ref[...]         # [tk, 3D]
    k_all = _rope(kv[:, :kd_w], cosk_ref[...], sink_ref[...]).astype(bf16)
    v_all = kv[:, kd_w:].astype(bf16)                               # [tk, H*VD]
    q_all = q_sc[...]                                               # [tq, H*KD]

    for h in range(num_heads):
        ks, ke = h * keys_dim, (h + 1) * keys_dim
        vs, ve = h * vals_dim, (h + 1) * vals_dim
        scores = lax.dot_general(q_all[:, ks:ke], k_all[:, ks:ke],
                                 (((1,), (1,)), ((), ())),
                                 preferred_element_type=f32)        # [tq, tk]
        acc_sc[:, vs:ve] += jnp.dot(scores.astype(bf16), v_all[:, vs:ve],
                                    preferred_element_type=f32)

    # (C) finalize on the last kv tile: per-head LayerNorm + gating written
    #     in place into the gate scratch (no lane concatenates), one K=H*VD
    #     output projection, direct row-major store (no slab / transpose).
    @pl.when(ki == pl.num_programs(2) - 1)
    def _():
        nrm_w, nrm_b = nrm_w_ref[...], nrm_b_ref[...]
        for h in range(num_heads):
            vs, ve = h * vals_dim, (h + 1) * vals_dim
            gate_sc[:, vs:ve] = gate_sc[:, vs:ve] * _layernorm(
                acc_sc[:, vs:ve], nrm_w, nrm_b)
        y = jnp.dot(gate_sc[...].astype(bf16), wo_ref[...],
                    preferred_element_type=f32) + bo_ref[...]       # [tq, D]
        o_ref[...] = y.astype(o_ref.dtype)


def multi_scale_retention(x, fused, cos_lanes, sin_lanes, *,
                          num_heads, keys_dim, vals_dim,
                          q_tile=None, kv_tile=None):
    """Flash-style chunked MultiScaleRetention forward.

    grid = (batch, q-tiles, kv-tiles).  Batch and q-tile axes are "parallel"
    (megacore shards them on v7x), the kv axis is "arbitrary" and carries the
    f32 VMEM accumulator.  For production shapes pick q_tile/kv_tile as
    multiples of 256 on v6e/v7x (128 on v5e) and size them against v7x's
    64 MiB VMEM (vmem_limit_bytes below leaves headroom).
    """
    bs, seq, dim = x.shape
    kd_w = num_heads * keys_dim
    vd_w = num_heads * vals_dim
    tq = q_tile or seq
    tk = kv_tile or seq
    assert seq % tq == 0 and seq % tk == 0
    nq, nk = seq // tq, seq // tk

    x2d = x.reshape(bs * seq, dim)          # rows are (batch, seq)-major

    weights = (fused["pre_w"], fused["pre_b"],
               fused["w_qg"], fused["b_qg"],
               fused["w_kv"], fused["b_kv"],
               fused["w_o"], fused["b_o"],
               fused["nrm_w"], fused["nrm_b"])

    def const_spec(a):
        # Constant-index blocks: single-buffered — their index never changes,
        # double-buffering would only double their VMEM footprint.
        return pl.BlockSpec(a.shape, lambda b, qi, ki: (0, 0),
                            pipeline_mode=pl.Buffered(1))

    in_specs = [
        pl.BlockSpec((tq, dim), lambda b, qi, ki: (b * nq + qi, 0)),   # x (q rows)
        pl.BlockSpec((tk, dim), lambda b, qi, ki: (b * nk + ki, 0)),   # x (kv rows)
        pl.BlockSpec((tq, kd_w), lambda b, qi, ki: (qi, 0)),           # cos (q rows)
        pl.BlockSpec((tq, kd_w), lambda b, qi, ki: (qi, 0)),           # sin (q rows)
        pl.BlockSpec((tk, kd_w), lambda b, qi, ki: (ki, 0)),           # cos (kv rows)
        pl.BlockSpec((tk, kd_w), lambda b, qi, ki: (ki, 0)),           # sin (kv rows)
    ] + [const_spec(a) for a in weights]

    kernel = functools.partial(msr_kernel, num_heads=num_heads,
                               keys_dim=keys_dim, vals_dim=vals_dim)

    out = pl.pallas_call(
        kernel,
        out_shape=jax.ShapeDtypeStruct((bs * seq, dim), x.dtype),
        grid_spec=pltpu.PrefetchScalarGridSpec(
            num_scalar_prefetch=0,
            grid=(bs, nq, nk),
            in_specs=in_specs,
            out_specs=pl.BlockSpec((tq, dim),
                                   lambda b, qi, ki: (b * nq + qi, 0)),
            scratch_shapes=[pltpu.VMEM((tq, kd_w), jnp.bfloat16),   # RoPE'd q
                            pltpu.VMEM((tq, vd_w), jnp.float32),    # silu(gate)
                            pltpu.VMEM((tq, vd_w), jnp.float32)],   # f32 acc
        ),
        compiler_params=pltpu.CompilerParams(
            dimension_semantics=("parallel", "parallel", "arbitrary"),
            vmem_limit_bytes=48 * 1024 * 1024),
    )(x2d, x2d, cos_lanes, sin_lanes, cos_lanes, sin_lanes, *weights)

    # Rows already (batch, seq)-major: plain reshape, no transpose / HBM copy.
    return out.reshape(bs, seq, dim)


def prepare_params(params, *, scaling):
    """One-time constant folding: fused q|g and k|v weights (k-scaling folded
    into the k part), bf16 matmul weights, f32 biases / LayerNorm params."""
    bf16 = jnp.bfloat16
    w_qg = jnp.concatenate([params["wq"], params["wg"]], axis=1).astype(bf16)
    b_qg = jnp.concatenate([params["bq"], params["bg"]], axis=1)
    w_kv = jnp.concatenate([params["wk"] * scaling, params["wv"]],
                           axis=1).astype(bf16)
    b_kv = jnp.concatenate([params["bk"] * scaling, params["bv"]], axis=1)
    # TODO(synk): on v7x consider fp8 w_qg/w_kv/w_o (bf16+fp8 MXU) to halve
    # resident weight VMEM; not a drop-in on v5e/v6e.
    return dict(w_qg=w_qg, b_qg=b_qg, w_kv=w_kv, b_kv=b_kv,
                w_o=params["wo"].astype(bf16), b_o=params["bo"],
                pre_w=params["pre_w"], pre_b=params["pre_b"],
                nrm_w=params["nrm_w"], nrm_b=params["nrm_b"])


def prepare_rope(seq, num_heads, keys_dim):
    """RetNet RoPE angles (module buffers).  Returns the per-head [S, KD]
    tables for the reference plus [S, H*KD] kernel tables (no batch
    replication) with the rotation sign folded into sin."""
    angle = 1.0 / (10000.0 ** jnp.linspace(0.0, 1.0, keys_dim // 2))
    angle = jnp.repeat(angle, 2)                               # [KD]
    pos = jnp.arange(seq, dtype=jnp.float32)[:, None]          # [S, 1]
    cos = jnp.cos(pos * angle[None, :]).astype(jnp.float32)    # [S, KD]
    sin = jnp.sin(pos * angle[None, :]).astype(jnp.float32)    # [S, KD]
    sign = jnp.tile(jnp.array([-1.0, 1.0], jnp.float32), keys_dim // 2)
    cos_lanes = jnp.tile(cos, (1, num_heads))                  # [S, H*KD]
    sin_lanes = jnp.tile(sin * sign, (1, num_heads))           # [S, H*KD]
    return cos, sin, cos_lanes, sin_lanes


def reference(x, params, cos, sin, *, num_heads, keys_dim, vals_dim, scaling):
    """Pure-JAX f32 reference of the default MultiScaleRetention forward."""
    bs, seq, dim = x.shape
    xn = _layernorm(x, params["pre_w"], params["pre_b"])
    gate = xn @ params["wg"] + params["bg"]
    q = xn @ params["wq"] + params["bq"]
    k = (xn @ params["wk"] + params["bk"]) * scaling
    v = xn @ params["wv"] + params["bv"]

    q = q.reshape(bs, seq, num_heads, keys_dim).transpose(0, 2, 1, 3)
    k = k.reshape(bs, seq, num_heads, keys_dim).transpose(0, 2, 1, 3)
    v = v.reshape(bs, seq, num_heads, vals_dim).transpose(0, 2, 1, 3)

    def rope(t):
        rot = jnp.stack((-t[..., 1::2], t[..., 0::2]), axis=-1).reshape(t.shape)
        return t * cos + rot * sin

    q, k = rope(q), rope(k)
    ret = jnp.einsum("bhid,bhjd->bhij", q, k)
    out = jnp.einsum("bhij,bhjd->bhid", ret, v)
    out = _layernorm(out, params["nrm_w"], params["nrm_b"])
    out = out.transpose(0, 2, 1, 3).reshape(bs, seq, num_heads * vals_dim)
    out = jax.nn.silu(gate) * out
    return out @ params["wo"] + params["bo"]


if __name__ == "__main__":
    dim_model, num_heads, value_factor = 64, 2, 2
    bs, seq = 2, 32
    keys_dim = dim_model // num_heads                      # 32
    vals_dim = dim_model * value_factor // num_heads       # 64
    scaling = keys_dim ** (-0.5)

    key = jax.random.PRNGKey(0)
    keys = jax.random.split(key, 8)

    def linear(k, fan_in, fan_out):
        kw, kb = jax.random.split(k)
        lim = 1.0 / np.sqrt(fan_in)
        w = jax.random.uniform(kw, (fan_in, fan_out), jnp.float32, -lim, lim)
        b = jax.random.uniform(kb, (1, fan_out), jnp.float32, -lim, lim)
        return w, b

    wq, bq = linear(keys[0], dim_model, dim_model)
    wk, bk = linear(keys[1], dim_model, dim_model)
    wv, bv = linear(keys[2], dim_model, dim_model * value_factor)
    wg, bg = linear(keys[3], dim_model, dim_model * value_factor)
    wo, bo = linear(keys[4], dim_model * value_factor, dim_model)

    params = dict(
        wq=wq, bq=bq, wk=wk, bk=bk, wv=wv, bv=bv, wg=wg, bg=bg, wo=wo, bo=bo,
        pre_w=1.0 + 0.05 * jax.random.normal(keys[5], (1, dim_model), jnp.float32),
        pre_b=0.05 * jax.random.normal(keys[6], (1, dim_model), jnp.float32),
        nrm_w=jnp.ones((1, vals_dim), jnp.float32),
        nrm_b=jnp.zeros((1, vals_dim), jnp.float32),
    )

    fused = prepare_params(params, scaling=scaling)
    cos, sin, cos_lanes, sin_lanes = prepare_rope(seq, num_heads, keys_dim)

    x = jax.random.normal(keys[7], (bs, seq, dim_model), jnp.float32)

    # q_tile/kv_tile = 16 at the toy seq=32 -> grid (2, 2, 2) so the flash
    # accumulation, init and finalize branches are all actually exercised.
    out = multi_scale_retention(x, fused, cos_lanes, sin_lanes,
                                num_heads=num_heads, keys_dim=keys_dim,
                                vals_dim=vals_dim, q_tile=16, kv_tile=16)
    out = jax.block_until_ready(out)

    ref = reference(x, params, cos, sin,
                    num_heads=num_heads, keys_dim=keys_dim,
                    vals_dim=vals_dim, scaling=scaling)
    ref = jax.block_until_ready(ref)

    # bf16 MXU operands (f32 accumulation) vs the f32 reference.
    np.testing.assert_allclose(np.asarray(out), np.asarray(ref),
                               rtol=2e-2, atol=2e-2)
    print("KERNEL_OK")
</pallas_src>

<mosaic_0001>
module attributes {stable_mosaic.version = 11 : i64} {
  func.func @msr_kernel(%arg0: i32, %arg1: i32, %arg2: i32, %arg3: memref<16x64xf32, #tpu.memory_space<vmem>>, %arg4: memref<16x64xf32, #tpu.memory_space<vmem>>, %arg5: memref<16x64xf32, #tpu.memory_space<vmem>>, %arg6: memref<16x64xf32, #tpu.memory_space<vmem>>, %arg7: memref<16x64xf32, #tpu.memory_space<vmem>>, %arg8: memref<16x64xf32, #tpu.memory_space<vmem>>, %arg9: memref<1x64xf32, #tpu.memory_space<vmem>>, %arg10: memref<1x64xf32, #tpu.memory_space<vmem>>, %arg11: memref<64x192xbf16, #tpu.memory_space<vmem>>, %arg12: memref<1x192xf32, #tpu.memory_space<vmem>>, %arg13: memref<64x192xbf16, #tpu.memory_space<vmem>>, %arg14: memref<1x192xf32, #tpu.memory_space<vmem>>, %arg15: memref<128x64xbf16, #tpu.memory_space<vmem>>, %arg16: memref<1x64xf32, #tpu.memory_space<vmem>>, %arg17: memref<1x64xf32, #tpu.memory_space<vmem>>, %arg18: memref<1x64xf32, #tpu.memory_space<vmem>>, %arg19: memref<16x64xf32, #tpu.memory_space<vmem>>, %arg20: memref<16x64xbf16, #tpu.memory_space<vmem>>, %arg21: memref<16x128xf32, #tpu.memory_space<vmem>>, %arg22: memref<16x128xf32, #tpu.memory_space<vmem>>) attributes {dimension_semantics = [#tpu.dimension_semantics<parallel>, #tpu.dimension_semantics<parallel>, #tpu.dimension_semantics<arbitrary>], iteration_bounds = array<i64: 2, 2, 2>, scalar_prefetch = 0 : i64, scratch_operands = 3 : i64, tpu.core_type = #tpu.core_type<tc>, window_params = [{transform_indices = @transform_0, window_bounds = array<i64: 16, 64>}, {transform_indices = @transform_1, window_bounds = array<i64: 16, 64>}, {transform_indices = @transform_2, window_bounds = array<i64: 16, 64>}, {transform_indices = @transform_3, window_bounds = array<i64: 16, 64>}, {transform_indices = @transform_4, window_bounds = array<i64: 16, 64>}, {transform_indices = @transform_5, window_bounds = array<i64: 16, 64>}, {pipeline_mode = #tpu.pipeline_mode<synchronous>, transform_indices = @transform_6, window_bounds = array<i64: 1, 64>}, {pipeline_mode = #tpu.pipeline_mode<synchronous>, transform_indices = @transform_7, window_bounds = array<i64: 1, 64>}, {pipeline_mode = #tpu.pipeline_mode<synchronous>, transform_indices = @transform_8, window_bounds = array<i64: 64, 192>}, {pipeline_mode = #tpu.pipeline_mode<synchronous>, transform_indices = @transform_9, window_bounds = array<i64: 1, 192>}, {pipeline_mode = #tpu.pipeline_mode<synchronous>, transform_indices = @transform_10, window_bounds = array<i64: 64, 192>}, {pipeline_mode = #tpu.pipeline_mode<synchronous>, transform_indices = @transform_11, window_bounds = array<i64: 1, 192>}, {pipeline_mode = #tpu.pipeline_mode<synchronous>, transform_indices = @transform_12, window_bounds = array<i64: 128, 64>}, {pipeline_mode = #tpu.pipeline_mode<synchronous>, transform_indices = @transform_13, window_bounds = array<i64: 1, 64>}, {pipeline_mode = #tpu.pipeline_mode<synchronous>, transform_indices = @transform_14, window_bounds = array<i64: 1, 64>}, {pipeline_mode = #tpu.pipeline_mode<synchronous>, transform_indices = @transform_15, window_bounds = array<i64: 1, 64>}, {transform_indices = @transform_16, window_bounds = array<i64: 16, 64>}]} {
    %c0_i32 = arith.constant 0 : i32
    %0 = arith.cmpi eq, %arg2, %c0_i32 : i32
    %1 = arith.extui %0 : i1 to i32
    %c0_i32_0 = arith.constant 0 : i32
    %2 = arith.cmpi ne, %1, %c0_i32_0 : i32
    scf.if %2 {
      %c0_40 = arith.constant 0 : index
      %c0_41 = arith.constant 0 : index
      %87 = vector.load %arg3[%c0_40, %c0_41] : memref<16x64xf32, #tpu.memory_space<vmem>>, vector<16x64xf32>
      %c0_42 = arith.constant 0 : index
      %c0_43 = arith.constant 0 : index
      %88 = vector.load %arg9[%c0_42, %c0_43] : memref<1x64xf32, #tpu.memory_space<vmem>>, vector<1x64xf32>
      %c0_44 = arith.constant 0 : index
      %c0_45 = arith.constant 0 : index
      %89 = vector.load %arg10[%c0_44, %c0_45] : memref<1x64xf32, #tpu.memory_space<vmem>>, vector<1x64xf32>
      %cst_46 = arith.constant dense<0.000000e+00> : vector<16xf32>
      %90 = vector.multi_reduction <add>, %87, %cst_46 [1] : vector<16x64xf32> to vector<16xf32>
      %91 = vector.shape_cast %90 : vector<16xf32> to vector<16x1xf32>
      %cst_47 = arith.constant 6.400000e+01 : f32
      %92 = vector.broadcast %cst_47 : f32 to vector<16x1xf32>
      %93 = arith.divf %91, %92 : vector<16x1xf32>
      %94 = vector.broadcast %93 : vector<16x1xf32> to vector<16x64xf32>
      %95 = arith.subf %87, %94 : vector<16x64xf32>
      %96 = arith.mulf %95, %95 : vector<16x64xf32>
      %cst_48 = arith.constant dense<0.000000e+00> : vector<16xf32>
      %97 = vector.multi_reduction <add>, %96, %cst_48 [1] : vector<16x64xf32> to vector<16xf32>
      %98 = vector.shape_cast %97 : vector<16xf32> to vector<16x1xf32>
      %cst_49 = arith.constant 6.400000e+01 : f32
      %99 = vector.broadcast %cst_49 : f32 to vector<16x1xf32>
      %100 = arith.divf %98, %99 : vector<16x1xf32>
      %101 = vector.broadcast %93 : vector<16x1xf32> to vector<16x64xf32>
      %102 = arith.subf %87, %101 : vector<16x64xf32>
      %cst_50 = arith.constant 9.99999974E-6 : f32
      %103 = vector.broadcast %cst_50 : f32 to vector<16x1xf32>
      %104 = arith.addf %100, %103 : vector<16x1xf32>
      %105 = math.rsqrt %104 : vector<16x1xf32>
      %106 = vector.broadcast %105 : vector<16x1xf32> to vector<16x64xf32>
      %107 = arith.mulf %102, %106 : vector<16x64xf32>
      %108 = vector.broadcast %88 : vector<1x64xf32> to vector<16x64xf32>
      %109 = arith.mulf %107, %108 : vector<16x64xf32>
      %110 = vector.broadcast %89 : vector<1x64xf32> to vector<16x64xf32>
      %111 = arith.addf %109, %110 : vector<16x64xf32>
      %112 = arith.truncf %111 : vector<16x64xf32> to vector<16x64xbf16>
      %c0_51 = arith.constant 0 : index
      %c0_52 = arith.constant 0 : index
      %113 = vector.load %arg11[%c0_51, %c0_52] : memref<64x192xbf16, #tpu.memory_space<vmem>>, vector<64x192xbf16>
      %cst_53 = arith.constant dense<0.000000e+00> : vector<16x192xf32>
      %114 = tpu.matmul %112, %113, %cst_53 {dimension_numbers = #tpu.dot_dimension_numbers<[1], [0], [0], [1], [0, 0, 1, 1], [], []>} : vector<16x64xbf16>, vector<64x192xbf16>, vector<16x192xf32> -> vector<16x192xf32>
      %c0_54 = arith.constant 0 : index
      %c0_55 = arith.constant 0 : index
      %115 = vector.load %arg12[%c0_54, %c0_55] : memref<1x192xf32, #tpu.memory_space<vmem>>, vector<1x192xf32>
      %116 = vector.broadcast %115 : vector<1x192xf32> to vector<16x192xf32>
      %117 = arith.addf %114, %116 : vector<16x192xf32>
      %118 = vector.extract_strided_slice %117 {offsets = [0, 0], sizes = [16, 64], strides = [1, 1]} : vector<16x192xf32> to vector<16x64xf32>
      %c0_56 = arith.constant 0 : index
      %c0_57 = arith.constant 0 : index
      %119 = vector.load %arg5[%c0_56, %c0_57] : memref<16x64xf32, #tpu.memory_space<vmem>>, vector<16x64xf32>
      %c0_58 = arith.constant 0 : index
      %c0_59 = arith.constant 0 : index
      %120 = vector.load %arg6[%c0_58, %c0_59] : memref<16x64xf32, #tpu.memory_space<vmem>>, vector<16x64xf32>
      %121 = tpu.iota {dimensions = array<i32: 1>} : vector<16x64xi32>
      %c1_i32_60 = arith.constant 1 : i32
      %122 = tpu.dynamic_rotate %118 by %c1_i32_60 dim 1 : vector<16x64xf32>, i32 -> vector<16x64xf32>
      %c63_i32_61 = arith.constant 63 : i32
      %123 = tpu.dynamic_rotate %118 by %c63_i32_61 dim 1 : vector<16x64xf32>, i32 -> vector<16x64xf32>
      %c2_i32_62 = arith.constant 2 : i32
      %c0_i32_63 = arith.constant 0 : i32
      %124 = arith.cmpi eq, %c2_i32_62, %c0_i32_63 : i32
      %c1_i32_64 = arith.constant 1 : i32
      %125 = arith.select %124, %c1_i32_64, %c2_i32_62 : i32
      %126 = vector.broadcast %125 : i32 to vector<16x64xi32>
      %127 = arith.remsi %121, %126 : vector<16x64xi32>
      %c0_i32_65 = arith.constant 0 : i32
      %128 = vector.broadcast %c0_i32_65 : i32 to vector<16x64xi32>
      %129 = arith.cmpi ne, %127, %128 : vector<16x64xi32>
      %c0_i32_66 = arith.constant 0 : i32
      %130 = vector.broadcast %c0_i32_66 : i32 to vector<16x64xi32>
      %131 = arith.cmpi slt, %127, %130 : vector<16x64xi32>
      %c0_i32_67 = arith.constant 0 : i32
      %132 = arith.cmpi slt, %125, %c0_i32_67 : i32
      %133 = vector.broadcast %132 : i1 to vector<16x64xi1>
      %134 = vector.broadcast %133 : vector<16x64xi1> to vector<16x64xi1>
      %135 = arith.xori %131, %134 : vector<16x64xi1>
      %136 = arith.andi %135, %129 : vector<16x64xi1>
      %137 = vector.broadcast %125 : i32 to vector<16x64xi32>
      %138 = arith.addi %127, %137 : vector<16x64xi32>
      %139 = arith.select %136, %138, %127 : vector<16x64xi1>, vector<16x64xi32>
      %c0_i32_68 = arith.constant 0 : i32
      %140 = vector.broadcast %c0_i32_68 : i32 to vector<16x64xi32>
      %141 = arith.cmpi eq, %139, %140 : vector<16x64xi32>
      %142 = arith.select %141, %123, %122 : vector<16x64xi1>, vector<16x64xf32>
      %143 = arith.mulf %118, %119 : vector<16x64xf32>
      %144 = arith.mulf %142, %120 : vector<16x64xf32>
      %145 = arith.addf %143, %144 : vector<16x64xf32>
      %146 = arith.truncf %145 : vector<16x64xf32> to vector<16x64xbf16>
      %c0_69 = arith.constant 0 : index
      %c0_70 = arith.constant 0 : index
      %147 = vector.load %arg20[%c0_69, %c0_70] : memref<16x64xbf16, #tpu.memory_space<vmem>>, vector<16x64xbf16>
      tpu.vector_store %arg20[%c0_69, %c0_70], %146 {strides = array<i32>} : memref<16x64xbf16, #tpu.memory_space<vmem>>, vector<16x64xbf16>,
      %148 = vector.extract_strided_slice %117 {offsets = [0, 64], sizes = [16, 128], strides = [1, 1]} : vector<16x192xf32> to vector<16x128xf32>
      %149 = arith.negf %148 : vector<16x128xf32>
      %150 = math.exp %149 : vector<16x128xf32>
      %cst_71 = arith.constant 1.000000e+00 : f32
      %151 = vector.broadcast %cst_71 : f32 to vector<16x128xf32>
      %152 = arith.addf %151, %150 : vector<16x128xf32>
      %153 = arith.divf %151, %152 : vector<16x128xf32>
      %154 = arith.mulf %148, %153 : vector<16x128xf32>
      %c0_72 = arith.constant 0 : index
      %c0_73 = arith.constant 0 : index
      %155 = vector.load %arg21[%c0_72, %c0_73] : memref<16x128xf32, #tpu.memory_space<vmem>>, vector<16x128xf32>
      tpu.vector_store %arg21[%c0_72, %c0_73], %154 {strides = array<i32>} : memref<16x128xf32, #tpu.memory_space<vmem>>, vector<16x128xf32>,
      %cst_74 = arith.constant 0.000000e+00 : f32
      %156 = vector.broadcast %cst_74 : f32 to vector<16x128xf32>
      %c0_75 = arith.constant 0 : index
      %c0_76 = arith.constant 0 : index
      %157 = vector.load %arg22[%c0_75, %c0_76] : memref<16x128xf32, #tpu.memory_space<vmem>>, vector<16x128xf32>
      tpu.vector_store %arg22[%c0_75, %c0_76], %156 {strides = array<i32>} : memref<16x128xf32, #tpu.memory_space<vmem>>, vector<16x128xf32>,
    } else {
    }
    %c0 = arith.constant 0 : index
    %c0_1 = arith.constant 0 : index
    %3 = vector.load %arg4[%c0, %c0_1] : memref<16x64xf32, #tpu.memory_space<vmem>>, vector<16x64xf32>
    %c0_2 = arith.constant 0 : index
    %c0_3 = arith.constant 0 : index
    %4 = vector.load %arg9[%c0_2, %c0_3] : memref<1x64xf32, #tpu.memory_space<vmem>>, vector<1x64xf32>
    %c0_4 = arith.constant 0 : index
    %c0_5 = arith.constant 0 : index
    %5 = vector.load %arg10[%c0_4, %c0_5] : memref<1x64xf32, #tpu.memory_space<vmem>>, vector<1x64xf32>
    %cst = arith.constant dense<0.000000e+00> : vector<16xf32>
    %6 = vector.multi_reduction <add>, %3, %cst [1] : vector<16x64xf32> to vector<16xf32>
    %7 = vector.shape_cast %6 : vector<16xf32> to vector<16x1xf32>
    %cst_6 = arith.constant 6.400000e+01 : f32
    %8 = vector.broadcast %cst_6 : f32 to vector<16x1xf32>
    %9 = arith.divf %7, %8 : vector<16x1xf32>
    %10 = vector.broadcast %9 : vector<16x1xf32> to vector<16x64xf32>
    %11 = arith.subf %3, %10 : vector<16x64xf32>
    %12 = arith.mulf %11, %11 : vector<16x64xf32>
    %cst_7 = arith.constant dense<0.000000e+00> : vector<16xf32>
    %13 = vector.multi_reduction <add>, %12, %cst_7 [1] : vector<16x64xf32> to vector<16xf32>
    %14 = vector.shape_cast %13 : vector<16xf32> to vector<16x1xf32>
    %cst_8 = arith.constant 6.400000e+01 : f32
    %15 = vector.broadcast %cst_8 : f32 to vector<16x1xf32>
    %16 = arith.divf %14, %15 : vector<16x1xf32>
    %17 = vector.broadcast %9 : vector<16x1xf32> to vector<16x64xf32>
    %18 = arith.subf %3, %17 : vector<16x64xf32>
    %cst_9 = arith.constant 9.99999974E-6 : f32
    %19 = vector.broadcast %cst_9 : f32 to vector<16x1xf32>
    %20 = arith.addf %16, %19 : vector<16x1xf32>
    %21 = math.rsqrt %20 : vector<16x1xf32>
    %22 = vector.broadcast %21 : vector<16x1xf32> to vector<16x64xf32>
    %23 = arith.mulf %18, %22 : vector<16x64xf32>
    %24 = vector.broadcast %4 : vector<1x64xf32> to vector<16x64xf32>
    %25 = arith.mulf %23, %24 : vector<16x64xf32>
    %26 = vector.broadcast %5 : vector<1x64xf32> to vector<16x64xf32>
    %27 = arith.addf %25, %26 : vector<16x64xf32>
    %28 = arith.truncf %27 : vector<16x64xf32> to vector<16x64xbf16>
    %c0_10 = arith.constant 0 : index
    %c0_11 = arith.constant 0 : index
    %29 = vector.load %arg13[%c0_10, %c0_11] : memref<64x192xbf16, #tpu.memory_space<vmem>>, vector<64x192xbf16>
    %cst_12 = arith.constant dense<0.000000e+00> : vector<16x192xf32>
    %30 = tpu.matmul %28, %29, %cst_12 {dimension_numbers = #tpu.dot_dimension_numbers<[1], [0], [0], [1], [0, 0, 1, 1], [], []>} : vector<16x64xbf16>, vector<64x192xbf16>, vector<16x192xf32> -> vector<16x192xf32>
    %c0_13 = arith.constant 0 : index
    %c0_14 = arith.constant 0 : index
    %31 = vector.load %arg14[%c0_13, %c0_14] : memref<1x192xf32, #tpu.memory_space<vmem>>, vector<1x192xf32>
    %32 = vector.broadcast %31 : vector<1x192xf32> to vector<16x192xf32>
    %33 = arith.addf %30, %32 : vector<16x192xf32>
    %34 = vector.extract_strided_slice %33 {offsets = [0, 0], sizes = [16, 64], strides = [1, 1]} : vector<16x192xf32> to vector<16x64xf32>
    %c0_15 = arith.constant 0 : index
    %c0_16 = arith.constant 0 : index
    %35 = vector.load %arg7[%c0_15, %c0_16] : memref<16x64xf32, #tpu.memory_space<vmem>>, vector<16x64xf32>
    %c0_17 = arith.constant 0 : index
    %c0_18 = arith.constant 0 : index
    %36 = vector.load %arg8[%c0_17, %c0_18] : memref<16x64xf32, #tpu.memory_space<vmem>>, vector<16x64xf32>
    %37 = tpu.iota {dimensions = array<i32: 1>} : vector<16x64xi32>
    %c1_i32 = arith.constant 1 : i32
    %38 = tpu.dynamic_rotate %34 by %c1_i32 dim 1 : vector<16x64xf32>, i32 -> vector<16x64xf32>
    %c63_i32 = arith.constant 63 : i32
    %39 = tpu.dynamic_rotate %34 by %c63_i32 dim 1 : vector<16x64xf32>, i32 -> vector<16x64xf32>
    %c2_i32 = arith.constant 2 : i32
    %c0_i32_19 = arith.constant 0 : i32
    %40 = arith.cmpi eq, %c2_i32, %c0_i32_19 : i32
    %c1_i32_20 = arith.constant 1 : i32
    %41 = arith.select %40, %c1_i32_20, %c2_i32 : i32
    %42 = vector.broadcast %41 : i32 to vector<16x64xi32>
    %43 = arith.remsi %37, %42 : vector<16x64xi32>
    %c0_i32_21 = arith.constant 0 : i32
    %44 = vector.broadcast %c0_i32_21 : i32 to vector<16x64xi32>
    %45 = arith.cmpi ne, %43, %44 : vector<16x64xi32>
    %c0_i32_22 = arith.constant 0 : i32
    %46 = vector.broadcast %c0_i32_22 : i32 to vector<16x64xi32>
    %47 = arith.cmpi slt, %43, %46 : vector<16x64xi32>
    %c0_i32_23 = arith.constant 0 : i32
    %48 = arith.cmpi slt, %41, %c0_i32_23 : i32
    %49 = vector.broadcast %48 : i1 to vector<16x64xi1>
    %50 = vector.broadcast %49 : vector<16x64xi1> to vector<16x64xi1>
    %51 = arith.xori %47, %50 : vector<16x64xi1>
    %52 = arith.andi %51, %45 : vector<16x64xi1>
    %53 = vector.broadcast %41 : i32 to vector<16x64xi32>
    %54 = arith.addi %43, %53 : vector<16x64xi32>
    %55 = arith.select %52, %54, %43 : vector<16x64xi1>, vector<16x64xi32>
    %c0_i32_24 = arith.constant 0 : i32
    %56 = vector.broadcast %c0_i32_24 : i32 to vector<16x64xi32>
    %57 = arith.cmpi eq, %55, %56 : vector<16x64xi32>
    %58 = arith.select %57, %39, %38 : vector<16x64xi1>, vector<16x64xf32>
    %59 = arith.mulf %34, %35 : vector<16x64xf32>
    %60 = arith.mulf %58, %36 : vector<16x64xf32>
    %61 = arith.addf %59, %60 : vector<16x64xf32>
    %62 = arith.truncf %61 : vector<16x64xf32> to vector<16x64xbf16>
    %63 = vector.extract_strided_slice %33 {offsets = [0, 64], sizes = [16, 128], strides = [1, 1]} : vector<16x192xf32> to vector<16x128xf32>
    %64 = arith.truncf %63 : vector<16x128xf32> to vector<16x128xbf16>
    %c0_25 = arith.constant 0 : index
    %c0_26 = arith.constant 0 : index
    %65 = vector.load %arg20[%c0_25, %c0_26] : memref<16x64xbf16, #tpu.memory_space<vmem>>, vector<16x64xbf16>
    %66 = vector.extract_strided_slice %65 {offsets = [0, 0], sizes = [16, 32], strides = [1, 1]} : vector<16x64xbf16> to vector<16x32xbf16>
    %67 = vector.extract_strided_slice %62 {offsets = [0, 0], sizes = [16, 32], strides = [1, 1]} : vector<16x64xbf16> to vector<16x32xbf16>
    %cst_27 = arith.constant dense<0.000000e+00> : vector<16x16xf32>
    %68 = tpu.matmul %66, %67, %cst_27 {dimension_numbers = #tpu.dot_dimension_numbers<[1], [1], [0], [0], [0, 0, 1, 0], [], []>} : vector<16x32xbf16>, vector<16x32xbf16>, vector<16x16xf32> -> vector<16x16xf32>
    %c0_28 = arith.constant 0 : index
    %c0_29 = arith.constant 0 : index
    %69 = vector.load %arg22[%c0_28, %c0_29] : memref<16x128xf32, #tpu.memory_space<vmem>>, vector<16x64xf32>
    %70 = arith.truncf %68 : vector<16x16xf32> to vector<16x16xbf16>
    %71 = vector.extract_strided_slice %64 {offsets = [0, 0], sizes = [16, 64], strides = [1, 1]} : vector<16x128xbf16> to vector<16x64xbf16>
    %cst_30 = arith.constant dense<0.000000e+00> : vector<16x64xf32>
    %72 = tpu.matmul %70, %71, %cst_30 {dimension_numbers = #tpu.dot_dimension_numbers<[1], [0], [0], [1], [0, 0, 1, 1], [], []>} : vector<16x16xbf16>, vector<16x64xbf16>, vector<16x64xf32> -> vector<16x64xf32>
    %73 = arith.addf %69, %72 : vector<16x64xf32>
    %c0_31 = arith.constant 0 : index
    %c0_32 = arith.constant 0 : index
    %74 = vector.load %arg22[%c0_31, %c0_32] : memref<16x128xf32, #tpu.memory_space<vmem>>, vector<16x64xf32>
    tpu.vector_store %arg22[%c0_31, %c0_32], %73 {strides = array<i32>} : memref<16x128xf32, #tpu.memory_space<vmem>>, vector<16x64xf32>,
    %75 = vector.extract_strided_slice %65 {offsets = [0, 32], sizes = [16, 32], strides = [1, 1]} : vector<16x64xbf16> to vector<16x32xbf16>
    %76 = vector.extract_strided_slice %62 {offsets = [0, 32], sizes = [16, 32], strides = [1, 1]} : vector<16x64xbf16> to vector<16x32xbf16>
    %cst_33 = arith.constant dense<0.000000e+00> : vector<16x16xf32>
    %77 = tpu.matmul %75, %76, %cst_33 {dimension_numbers = #tpu.dot_dimension_numbers<[1], [1], [0], [0], [0, 0, 1, 0], [], []>} : vector<16x32xbf16>, vector<16x32xbf16>, vector<16x16xf32> -> vector<16x16xf32>
    %c0_34 = arith.constant 0 : index
    %c64 = arith.constant 64 : index
    %78 = vector.load %arg22[%c0_34, %c64] : memref<16x128xf32, #tpu.memory_space<vmem>>, vector<16x64xf32>
    %79 = arith.truncf %77 : vector<16x16xf32> to vector<16x16xbf16>
    %80 = vector.extract_strided_slice %64 {offsets = [0, 64], sizes = [16, 64], strides = [1, 1]} : vector<16x128xbf16> to vector<16x64xbf16>
    %cst_35 = arith.constant dense<0.000000e+00> : vector<16x64xf32>
    %81 = tpu.matmul %79, %80, %cst_35 {dimension_numbers = #tpu.dot_dimension_numbers<[1], [0], [0], [1], [0, 0, 1, 1], [], []>} : vector<16x16xbf16>, vector<16x64xbf16>, vector<16x64xf32> -> vector<16x64xf32>
    %82 = arith.addf %78, %81 : vector<16x64xf32>
    %c0_36 = arith.constant 0 : index
    %c64_37 = arith.constant 64 : index
    %83 = vector.load %arg22[%c0_36, %c64_37] : memref<16x128xf32, #tpu.memory_space<vmem>>, vector<16x64xf32>
    tpu.vector_store %arg22[%c0_36, %c64_37], %82 {strides = array<i32>} : memref<16x128xf32, #tpu.memory_space<vmem>>, vector<16x64xf32>,
    %c1_i32_38 = arith.constant 1 : i32
    %84 = arith.cmpi eq, %arg2, %c1_i32_38 : i32
    %85 = arith.extui %84 : i1 to i32
    %c0_i32_39 = arith.constant 0 : i32
    %86 = arith.cmpi ne, %85, %c0_i32_39 : i32
    scf.if %86 {
      %c0_40 = arith.constant 0 : index
      %c0_41 = arith.constant 0 : index
      %87 = vector.load %arg17[%c0_40, %c0_41] : memref<1x64xf32, #tpu.memory_space<vmem>>, vector<1x64xf32>
      %c0_42 = arith.constant 0 : index
      %c0_43 = arith.constant 0 : index
      %88 = vector.load %arg18[%c0_42, %c0_43] : memref<1x64xf32, #tpu.memory_space<vmem>>, vector<1x64xf32>
      %c0_44 = arith.constant 0 : index
      %c0_45 = arith.constant 0 : index
      %89 = vector.load %arg21[%c0_44, %c0_45] : memref<16x128xf32, #tpu.memory_space<vmem>>, vector<16x64xf32>
      %c0_46 = arith.constant 0 : index
      %c0_47 = arith.constant 0 : index
      %90 = vector.load %arg22[%c0_46, %c0_47] : memref<16x128xf32, #tpu.memory_space<vmem>>, vector<16x64xf32>
      %cst_48 = arith.constant dense<0.000000e+00> : vector<16xf32>
      %91 = vector.multi_reduction <add>, %90, %cst_48 [1] : vector<16x64xf32> to vector<16xf32>
      %92 = vector.shape_cast %91 : vector<16xf32> to vector<16x1xf32>
      %cst_49 = arith.constant 6.400000e+01 : f32
      %93 = vector.broadcast %cst_49 : f32 to vector<16x1xf32>
      %94 = arith.divf %92, %93 : vector<16x1xf32>
      %95 = vector.broadcast %94 : vector<16x1xf32> to vector<16x64xf32>
      %96 = arith.subf %90, %95 : vector<16x64xf32>
      %97 = arith.mulf %96, %96 : vector<16x64xf32>
      %cst_50 = arith.constant dense<0.000000e+00> : vector<16xf32>
      %98 = vector.multi_reduction <add>, %97, %cst_50 [1] : vector<16x64xf32> to vector<16xf32>
      %99 = vector.shape_cast %98 : vector<16xf32> to vector<16x1xf32>
      %cst_51 = arith.constant 6.400000e+01 : f32
      %100 = vector.broadcast %cst_51 : f32 to vector<16x1xf32>
      %101 = arith.divf %99, %100 : vector<16x1xf32>
      %102 = vector.broadcast %94 : vector<16x1xf32> to vector<16x64xf32>
      %103 = arith.subf %90, %102 : vector<16x64xf32>
      %cst_52 = arith.constant 9.99999974E-6 : f32
      %104 = vector.broadcast %cst_52 : f32 to vector<16x1xf32>
      %105 = arith.addf %101, %104 : vector<16x1xf32>
      %106 = math.rsqrt %105 : vector<16x1xf32>
      %107 = vector.broadcast %106 : vector<16x1xf32> to vector<16x64xf32>
      %108 = arith.mulf %103, %107 : vector<16x64xf32>
      %109 = vector.broadcast %87 : vector<1x64xf32> to vector<16x64xf32>
      %110 = arith.mulf %108, %109 : vector<16x64xf32>
      %111 = vector.broadcast %88 : vector<1x64xf32> to vector<16x64xf32>
      %112 = arith.addf %110, %111 : vector<16x64xf32>
      %113 = arith.mulf %89, %112 : vector<16x64xf32>
      %c0_53 = arith.constant 0 : index
      %c0_54 = arith.constant 0 : index
      %114 = vector.load %arg21[%c0_53, %c0_54] : memref<16x128xf32, #tpu.memory_space<vmem>>, vector<16x64xf32>
      tpu.vector_store %arg21[%c0_53, %c0_54], %113 {strides = array<i32>} : memref<16x128xf32, #tpu.memory_space<vmem>>, vector<16x64xf32>,
      %c0_55 = arith.constant 0 : index
      %c64_56 = arith.constant 64 : index
      %115 = vector.load %arg21[%c0_55, %c64_56] : memref<16x128xf32, #tpu.memory_space<vmem>>, vector<16x64xf32>
      %c0_57 = arith.constant 0 : index
      %c64_58 = arith.constant 64 : index
      %116 = vector.load %arg22[%c0_57, %c64_58] : memref<16x128xf32, #tpu.memory_space<vmem>>, vector<16x64xf32>
      %cst_59 = arith.constant dense<0.000000e+00> : vector<16xf32>
      %117 = vector.multi_reduction <add>, %116, %cst_59 [1] : vector<16x64xf32> to vector<16xf32>
      %118 = vector.shape_cast %117 : vector<16xf32> to vector<16x1xf32>
      %cst_60 = arith.constant 6.400000e+01 : f32
      %119 = vector.broadcast %cst_60 : f32 to vector<16x1xf32>
      %120 = arith.divf %118, %119 : vector<16x1xf32>
      %121 = vector.broadcast %120 : vector<16x1xf32> to vector<16x64xf32>
      %122 = arith.subf %116, %121 : vector<16x64xf32>
      %123 = arith.mulf %122, %122 : vector<16x64xf32>
      %cst_61 = arith.constant dense<0.000000e+00> : vector<16xf32>
      %124 = vector.multi_reduction <add>, %123, %cst_61 [1] : vector<16x64xf32> to vector<16xf32>
      %125 = vector.shape_cast %124 : vector<16xf32> to vector<16x1xf32>
      %cst_62 = arith.constant 6.400000e+01 : f32
      %126 = vector.broadcast %cst_62 : f32 to vector<16x1xf32>
      %127 = arith.divf %125, %126 : vector<16x1xf32>
      %128 = vector.broadcast %120 : vector<16x1xf32> to vector<16x64xf32>
      %129 = arith.subf %116, %128 : vector<16x64xf32>
      %cst_63 = arith.constant 9.99999974E-6 : f32
      %130 = vector.broadcast %cst_63 : f32 to vector<16x1xf32>
      %131 = arith.addf %127, %130 : vector<16x1xf32>
      %132 = math.rsqrt %131 : vector<16x1xf32>
      %133 = vector.broadcast %132 : vector<16x1xf32> to vector<16x64xf32>
      %134 = arith.mulf %129, %133 : vector<16x64xf32>
      %135 = vector.broadcast %87 : vector<1x64xf32> to vector<16x64xf32>
      %136 = arith.mulf %134, %135 : vector<16x64xf32>
      %137 = vector.broadcast %88 : vector<1x64xf32> to vector<16x64xf32>
      %138 = arith.addf %136, %137 : vector<16x64xf32>
      %139 = arith.mulf %115, %138 : vector<16x64xf32>
      %c0_64 = arith.constant 0 : index
      %c64_65 = arith.constant 64 : index
      %140 = vector.load %arg21[%c0_64, %c64_65] : memref<16x128xf32, #tpu.memory_space<vmem>>, vector<16x64xf32>
      tpu.vector_store %arg21[%c0_64, %c64_65], %139 {strides = array<i32>} : memref<16x128xf32, #tpu.memory_space<vmem>>, vector<16x64xf32>,
      %c0_66 = arith.constant 0 : index
      %c0_67 = arith.constant 0 : index
      %141 = vector.load %arg21[%c0_66, %c0_67] : memref<16x128xf32, #tpu.memory_space<vmem>>, vector<16x128xf32>
      %142 = arith.truncf %141 : vector<16x128xf32> to vector<16x128xbf16>
      %c0_68 = arith.constant 0 : index
      %c0_69 = arith.constant 0 : index
      %143 = vector.load %arg15[%c0_68, %c0_69] : memref<128x64xbf16, #tpu.memory_space<vmem>>, vector<128x64xbf16>
      %cst_70 = arith.constant dense<0.000000e+00> : vector<16x64xf32>
      %144 = tpu.matmul %142, %143, %cst_70 {dimension_numbers = #tpu.dot_dimension_numbers<[1], [0], [0], [1], [0, 0, 1, 1], [], []>} : vector<16x128xbf16>, vector<128x64xbf16>, vector<16x64xf32> -> vector<16x64xf32>
      %c0_71 = arith.constant 0 : index
      %c0_72 = arith.constant 0 : index
      %145 = vector.load %arg16[%c0_71, %c0_72] : memref<1x64xf32, #tpu.memory_space<vmem>>, vector<1x64xf32>
      %146 = vector.broadcast %145 : vector<1x64xf32> to vector<16x64xf32>
      %147 = arith.addf %144, %146 : vector<16x64xf32>
      %c0_73 = arith.constant 0 : index
      %c0_74 = arith.constant 0 : index
      %148 = vector.load %arg19[%c0_73, %c0_74] : memref<16x64xf32, #tpu.memory_space<vmem>>, vector<16x64xf32>
      tpu.vector_store %arg19[%c0_73, %c0_74], %147 {strides = array<i32>} : memref<16x64xf32, #tpu.memory_space<vmem>>, vector<16x64xf32>,
    } else {
    }
    return
  }
  func.func @transform_0(%arg0: i32, %arg1: i32, %arg2: i32) -> (i32, i32) {
    %c2_i32 = arith.constant 2 : i32
    %0 = arith.muli %arg0, %c2_i32 : i32
    %1 = arith.addi %0, %arg1 : i32
    %c0_i32 = arith.constant 0 : i32
    %c0_i32_0 = arith.constant 0 : i32
    return %1, %c0_i32 : i32, i32
  }
  func.func @transform_1(%arg0: i32, %arg1: i32, %arg2: i32) -> (i32, i32) {
    %c2_i32 = arith.constant 2 : i32
    %0 = arith.muli %arg0, %c2_i32 : i32
    %1 = arith.addi %0, %arg2 : i32
    %c0_i32 = arith.constant 0 : i32
    %c0_i32_0 = arith.constant 0 : i32
    return %1, %c0_i32 : i32, i32
  }
  func.func @transform_2(%arg0: i32, %arg1: i32, %arg2: i32) -> (i32, i32) {
    %c0_i32 = arith.constant 0 : i32
    %c0_i32_0 = arith.constant 0 : i32
    return %arg1, %c0_i32 : i32, i32
  }
  func.func @transform_3(%arg0: i32, %arg1: i32, %arg2: i32) -> (i32, i32) {
    %c0_i32 = arith.constant 0 : i32
    %c0_i32_0 = arith.constant 0 : i32
    return %arg1, %c0_i32 : i32, i32
  }
  func.func @transform_4(%arg0: i32, %arg1: i32, %arg2: i32) -> (i32, i32) {
    %c0_i32 = arith.constant 0 : i32
    %c0_i32_0 = arith.constant 0 : i32
    return %arg2, %c0_i32 : i32, i32
  }
  func.func @transform_5(%arg0: i32, %arg1: i32, %arg2: i32) -> (i32, i32) {
    %c0_i32 = arith.constant 0 : i32
    %c0_i32_0 = arith.constant 0 : i32
    return %arg2, %c0_i32 : i32, i32
  }
  func.func @transform_6(%arg0: i32, %arg1: i32, %arg2: i32) -> (i32, i32) {
    %c0_i32 = arith.constant 0 : i32
    %c0_i32_0 = arith.constant 0 : i32
    %c0_i32_1 = arith.constant 0 : i32
    return %c0_i32, %c0_i32_0 : i32, i32
  }
  func.func @transform_7(%arg0: i32, %arg1: i32, %arg2: i32) -> (i32, i32) {
    %c0_i32 = arith.constant 0 : i32
    %c0_i32_0 = arith.constant 0 : i32
    %c0_i32_1 = arith.constant 0 : i32
    return %c0_i32, %c0_i32_0 : i32, i32
  }
  func.func @transform_8(%arg0: i32, %arg1: i32, %arg2: i32) -> (i32, i32) {
    %c0_i32 = arith.constant 0 : i32
    %c0_i32_0 = arith.constant 0 : i32
    %c0_i32_1 = arith.constant 0 : i32
    return %c0_i32, %c0_i32_0 : i32, i32
  }
  func.func @transform_9(%arg0: i32, %arg1: i32, %arg2: i32) -> (i32, i32) {
    %c0_i32 = arith.constant 0 : i32
    %c0_i32_0 = arith.constant 0 : i32
    %c0_i32_1 = arith.constant 0 : i32
    return %c0_i32, %c0_i32_0 : i32, i32
  }
  func.func @transform_10(%arg0: i32, %arg1: i32, %arg2: i32) -> (i32, i32) {
    %c0_i32 = arith.constant 0 : i32
    %c0_i32_0 = arith.constant 0 : i32
    %c0_i32_1 = arith.constant 0 : i32
    return %c0_i32, %c0_i32_0 : i32, i32
  }
  func.func @transform_11(%arg0: i32, %arg1: i32, %arg2: i32) -> (i32, i32) {
    %c0_i32 = arith.constant 0 : i32
    %c0_i32_0 = arith.constant 0 : i32
    %c0_i32_1 = arith.constant 0 : i32
    return %c0_i32, %c0_i32_0 : i32, i32
  }
  func.func @transform_12(%arg0: i32, %arg1: i32, %arg2: i32) -> (i32, i32) {
    %c0_i32 = arith.constant 0 : i32
    %c0_i32_0 = arith.constant 0 : i32
    %c0_i32_1 = arith.constant 0 : i32
    return %c0_i32, %c0_i32_0 : i32, i32
  }
  func.func @transform_13(%arg0: i32, %arg1: i32, %arg2: i32) -> (i32, i32) {
    %c0_i32 = arith.constant 0 : i32
    %c0_i32_0 = arith.constant 0 : i32
    %c0_i32_1 = arith.constant 0 : i32
    return %c0_i32, %c0_i32_0 : i32, i32
  }
  func.func @transform_14(%arg0: i32, %arg1: i32, %arg2: i32) -> (i32, i32) {
    %c0_i32 = arith.constant 0 : i32
    %c0_i32_0 = arith.constant 0 : i32
    %c0_i32_1 = arith.constant 0 : i32
    return %c0_i32, %c0_i32_0 : i32, i32
  }
  func.func @transform_15(%arg0: i32, %arg1: i32, %arg2: i32) -> (i32, i32) {
    %c0_i32 = arith.constant 0 : i32
    %c0_i32_0 = arith.constant 0 : i32
    %c0_i32_1 = arith.constant 0 : i32
    return %c0_i32, %c0_i32_0 : i32, i32
  }
  func.func @transform_16(%arg0: i32, %arg1: i32, %arg2: i32) -> (i32, i32) {
    %c2_i32 = arith.constant 2 : i32
    %0 = arith.muli %arg0, %c2_i32 : i32
    %1 = arith.addi %0, %arg1 : i32
    %c0_i32 = arith.constant 0 : i32
    %c0_i32_0 = arith.constant 0 : i32
    return %1, %c0_i32 : i32, i32
  }
}

</mosaic_0001>

<llo_original>
// kernel: tpu_custom_call.1
$region0: #{tpu_custom_call.1}
  #allocation0 [shape = 'u32[]', space=smem, size = 0x4, offset = 0x4, fixed_abs, tag = 'smem constant byte address 0x4 - core index']
  #allocation1 [shape = 'u32[144,128]{1,0:T(1,128)}', space=vmem, size = 0x12000, scoped, tag = 'internal scratch']
  #allocation2 [shape = 'bf16[16,64]{1,0:T(16,128)(2,1)}', space=vmem, size = 0x1000, scoped, tag = 'scratch operand']
  #allocation3 [shape = 'f32[16,128]{1,0:T(8,128)}', space=vmem, size = 0x2000, scoped, tag = 'scratch operand']
  #allocation4 [shape = 'f32[16,128]{1,0:T(8,128)}', space=vmem, size = 0x2000, scoped, tag = 'scratch operand']
  %s0 = inlined_call_operand.vmem [shape: f32[64,64], index: 0, kind: input, shape index: {}]
  %s1 = inlined_call_operand.hbm [shape: f32[64,64], index: 1, kind: input, shape index: {}]
  %s2 = inlined_call_operand.hbm [shape: f32[32,64], index: 2, kind: input, shape index: {}]
  %s3 = inlined_call_operand.hbm [shape: f32[32,64], index: 3, kind: input, shape index: {}]
  %s4 = inlined_call_operand.hbm [shape: f32[32,64], index: 4, kind: input, shape index: {}]
  %s5 = inlined_call_operand.hbm [shape: f32[32,64], index: 5, kind: input, shape index: {}]
  %s6 = inlined_call_operand.hbm [shape: f32[1,64], index: 6, kind: input, shape index: {}]
  %s7 = inlined_call_operand.hbm [shape: f32[1,64], index: 7, kind: input, shape index: {}]
  %s8 = inlined_call_operand.hbm [shape: bf16[64,192], index: 8, kind: input, shape index: {}]
  %s9 = inlined_call_operand.vmem [shape: f32[1,192], index: 9, kind: input, shape index: {}]
  %s10 = inlined_call_operand.vmem [shape: bf16[64,192], index: 10, kind: input, shape index: {}]
  %s11 = inlined_call_operand.vmem [shape: f32[1,192], index: 11, kind: input, shape index: {}]
  %s12 = inlined_call_operand.vmem [shape: bf16[128,64], index: 12, kind: input, shape index: {}]
  %s13 = inlined_call_operand.vmem [shape: f32[1,64], index: 13, kind: input, shape index: {}]
  %s14 = inlined_call_operand.vmem [shape: f32[1,64], index: 14, kind: input, shape index: {}]
  %s15 = inlined_call_operand.vmem [shape: f32[1,64], index: 15, kind: input, shape index: {}]
  %s16 = inlined_call_operand.hbm [shape: f32[64,64], index: 16, kind: output, shape index: {}]
  %s17 = sld [smem:[#allocation0]]
  $region137: #{tpu_custom_call.1} parent=0
    _
  %s19 = ssub.s32 1, %s17
  %s20 = scalar_select 0, %s19, %s17
  $region1: #{tpu_custom_call.1} parent=0
    #allocation5 [shape = 'u8[16384]{0}', space=vmem, size = 0x4000, scoped, tag = 'input window, operand 1']
    #allocation6 [shape = 's32[2]{0}', space=sflag, size = 0x8, scoped, tag = 'scoped memory for tpu_custom_call.1']
    #allocation7 [shape = 's32[2]{0}', space=sflag, size = 0x8, scoped, tag = 'scoped memory for tpu_custom_call.1']
    #allocation8 [shape = 'u8[16384]{0}', space=vmem, size = 0x4000, scoped, tag = 'input window, operand 2']
    #allocation9 [shape = 's32[2]{0}', space=sflag, size = 0x8, scoped, tag = 'scoped memory for tpu_custom_call.1']
    #allocation10 [shape = 'u8[16384]{0}', space=vmem, size = 0x4000, scoped, tag = 'input window, operand 3']
    #allocation11 [shape = 'u8[16384]{0}', space=vmem, size = 0x4000, scoped, tag = 'input window, operand 4']
    #allocation12 [shape = 's32[2]{0}', space=sflag, size = 0x8, scoped, tag = 'scoped memory for tpu_custom_call.1']
    #allocation13 [shape = 'u8[16384]{0}', space=vmem, size = 0x4000, scoped, tag = 'input window, operand 5']
    #allocation14 [shape = 'u8[512]{0}', space=vmem, size = 0x400, scoped, tag = 'input window, operand 6, single buffered']
    #allocation15 [shape = 's32[1]{0}', space=sflag, size = 0x4, scoped, tag = 'scoped memory for tpu_custom_call.1']
    #allocation16 [shape = 'u8[512]{0}', space=vmem, size = 0x400, scoped, tag = 'input window, operand 7, single buffered']
    #allocation17 [shape = 'u8[32768]{0}', space=vmem, size = 0x8000, scoped, tag = 'input window, operand 8, single buffered']
    #allocation18 [shape = 's32[1]{0}', space=sflag, size = 0x4, scoped, tag = 'scoped memory for tpu_custom_call.1']
    #allocation19 [shape = 'u8[16384]{0}', space=vmem, size = 0x4000, scoped, tag = 'output window, operand 0']
    %21 = vsyncpa [#allocation6], 0
    %s22 = scalar_lea.sflag [#allocation6], 1
    %23 = vsyncpa %s22, 0
    %24 = vsyncpa [#allocation9], 0
    %s25 = scalar_lea.sflag [#allocation9], 1
    %26 = vsyncpa %s25, 0
    %27 = vsyncpa [#allocation12], 0
    %s28 = scalar_lea.sflag [#allocation12], 1
    %29 = vsyncpa %s28, 0
    %30 = vsyncpa [#allocation15], 0
    %31 = vsyncpa [#allocation18], 0
    %32 = vsyncpa [#allocation7], 0
    %s33 = scalar_lea.sflag [#allocation7], 1
    %34 = vsyncpa %s33, 0
    loop: start=0, step=1, limit=10
    $region2: #{tpu_custom_call.1} parent=1 // loop_pre_header
      _
    $region3: #{tpu_custom_call.1} parent=1 // loop_header
      %s36 = sphi 0, %s40
      %p37 = scmp.ge.s32.totalorder %s36, 10
      %s43 = sphi 0, %s62
      %s44 = sphi 0, %s58
      %s45 = sphi 0, %s54
      %s46 = sphi 0, %s43
      %s47 = sphi 0, %s44
      %s48 = sphi 0, %s45
      %s49 = sphi 0, %s46
      %s50 = sphi 0, %s47
      %s51 = sphi 0, %s48
      %s69 = sphi 0, %s71
      %s72 = sphi 0, %s69
      %s73 = sphi 0, %s72
      %s89 = sphi 0, %s73
      %s99 = sphi 0, %s101
      %s102 = sphi 0, %s99
      %s103 = sphi 0, %s102
      %s119 = sphi 0, %s103
      %s125 = sphi 0, %s127
      %s128 = sphi 0, %s125
      %s129 = sphi 0, %s128
      %s145 = sphi 0, %s129
      %s151 = sphi 0, %s153
      %s154 = sphi 0, %s151
      %s155 = sphi 0, %s154
      %s171 = sphi 0, %s155
      %s177 = sphi 0, %s179
      %s180 = sphi 0, %s177
      %s181 = sphi 0, %s180
      %s197 = sphi 0, %s181
      %s203 = sphi 0, %s205
      %s206 = sphi 0, %s203
      %s207 = sphi 0, %s206
      %s223 = sphi 0, %s207
      %s227 = sphi 0, %s227
      %s229 = sphi 0, %s227
      %s230 = sphi 0, %s229
      %s244 = sphi 0, %s230
      %s248 = sphi 0, %s248
      %s250 = sphi 0, %s248
      %s251 = sphi 0, %s250
      %s265 = sphi 0, %s251
      %s269 = sphi 0, %s269
      %s271 = sphi 0, %s269
      %s272 = sphi 0, %s271
      %s286 = sphi 0, %s272
      %s290 = sphi 0, %s290
      %s292 = sphi 0, %s290
      %s293 = sphi 0, %s292
      %s307 = sphi 0, %s293
      %s311 = sphi 0, %s311
      %s313 = sphi 0, %s311
      %s314 = sphi 0, %s313
      %s328 = sphi 0, %s314
      %s332 = sphi 0, %s332
      %s334 = sphi 0, %s332
      %s335 = sphi 0, %s334
      %s349 = sphi 0, %s335
      %s353 = sphi 0, %s353
      %s355 = sphi 0, %s353
      %s356 = sphi 0, %s355
      %s370 = sphi 0, %s356
      %s374 = sphi 0, %s374
      %s376 = sphi 0, %s374
      %s377 = sphi 0, %s376
      %s391 = sphi 0, %s377
      %s395 = sphi 0, %s395
      %s397 = sphi 0, %s395
      %s398 = sphi 0, %s397
      %s412 = sphi 0, %s398
      %s416 = sphi 0, %s416
      %s418 = sphi 0, %s416
      %s419 = sphi 0, %s418
      %s433 = sphi 0, %s419
      %s443 = sphi 0, %s445
      %s446 = sphi 0, %s443
      %s447 = sphi 0, %s446
      %s463 = sphi 0, %s447
    $region4: #{tpu_custom_call.1} parent=1 // loop_header_branch
      %39 = sbr.rel (%p37) target = $region8
    $region5: #{tpu_custom_call.1} parent=1 // loop_body
      %s41 = ssub.s32 %s36, 1
      %s42 = ssub.s32 %s36, 2
      %s52 = sadd.s32 1, %s45
      %p53 = scmp.ge.s32.totalorder %s52, 2
      %s54 = scalar_select %p53, 0, %s52
      %s55 = sadd.s32 1, %s44
      %s56 = scalar_select %p53, %s55, %s44
      %p57 = scmp.ge.s32.totalorder %s56, 2
      %s58 = scalar_select %p57, 0, %s56
      %s59 = sadd.s32 1, %s43
      %s60 = scalar_select %p57, %s59, %s43
      %p61 = scmp.ge.s32.totalorder %s60, 2
      %s62 = scalar_select %p61, 0, %s60
      %s63 = smul.u32 %s43, 2
      %s64 = sadd.s32 %s63, %s44
      %s65 = smul.u32 %s62, 2
      %s66 = sadd.s32 %s65, %s58
      %s67 = ssub.s32 %s64, %s66
      %p68 = scmp.eq.s32.totalorder %s67, 0
      %s70 = sadd.s32 %s69, 1
      %s71 = scalar_select %p68, %s69, %s70
      %p74 = pneg %p68
      %p75 = scmp.eq.s32.totalorder %s36, 7
      %p76 = por %p74, %p75
      %p77 = scmp.ne.s32.totalorder %s69, %s72
      %p78 = scmp.eq.s32.totalorder %s36, 0
      %p79 = por %p77, %p78
      %p80 = scmp.ne.s32.totalorder %s69, %s72
      %p81 = scmp.eq.s32.totalorder %s41, 7
      %p82 = por %p80, %p81
      %p83 = scmp.ne.s32.totalorder %s72, %s73
      %p84 = scmp.eq.s32.totalorder %s41, 0
      %p85 = por %p83, %p84
      %p86 = scmp.ne.s32.totalorder %s72, %s73
      %p87 = scmp.eq.s32.totalorder %s42, 7
      %p88 = por %p86, %p87
      %p90 = scmp.ne.s32.totalorder %s73, %s89
      %p91 = scmp.eq.s32.totalorder %s42, 0
      %p92 = por %p90, %p91
      %s93 = smul.u32 %s43, 2
      %s94 = sadd.s32 %s93, %s45
      %s95 = smul.u32 %s62, 2
      %s96 = sadd.s32 %s95, %s54
      %s97 = ssub.s32 %s94, %s96
      %p98 = scmp.eq.s32.totalorder %s97, 0
      %s100 = sadd.s32 %s99, 1
      %s101 = scalar_select %p98, %s99, %s100
      %p104 = pneg %p98
      %p105 = scmp.eq.s32.totalorder %s36, 7
      %p106 = por %p104, %p105
      %p107 = scmp.ne.s32.totalorder %s99, %s102
      %p108 = scmp.eq.s32.totalorder %s36, 0
      %p109 = por %p107, %p108
      %p110 = scmp.ne.s32.totalorder %s99, %s102
      %p111 = scmp.eq.s32.totalorder %s41, 7
      %p112 = por %p110, %p111
      %p113 = scmp.ne.s32.totalorder %s102, %s103
      %p114 = scmp.eq.s32.totalorder %s41, 0
      %p115 = por %p113, %p114
      %p116 = scmp.ne.s32.totalorder %s102, %s103
      %p117 = scmp.eq.s32.totalorder %s42, 7
      %p118 = por %p116, %p117
      %p120 = scmp.ne.s32.totalorder %s103, %s119
      %p121 = scmp.eq.s32.totalorder %s42, 0
      %p122 = por %p120, %p121
      %s123 = ssub.s32 %s44, %s58
      %p124 = scmp.eq.s32.totalorder %s123, 0
      %s126 = sadd.s32 %s125, 1
      %s127 = scalar_select %p124, %s125, %s126
      %p130 = pneg %p124
      %p131 = scmp.eq.s32.totalorder %s36, 7
      %p132 = por %p130, %p131
      %p133 = scmp.ne.s32.totalorder %s125, %s128
      %p134 = scmp.eq.s32.totalorder %s36, 0
      %p135 = por %p133, %p134
      %p136 = scmp.ne.s32.totalorder %s125, %s128
      %p137 = scmp.eq.s32.totalorder %s41, 7
      %p138 = por %p136, %p137
      %p139 = scmp.ne.s32.totalorder %s128, %s129
      %p140 = scmp.eq.s32.totalorder %s41, 0
      %p141 = por %p139, %p140
      %p142 = scmp.ne.s32.totalorder %s128, %s129
      %p143 = scmp.eq.s32.totalorder %s42, 7
      %p144 = por %p142, %p143
      %p146 = scmp.ne.s32.totalorder %s129, %s145
      %p147 = scmp.eq.s32.totalorder %s42, 0
      %p148 = por %p146, %p147
      %s149 = ssub.s32 %s44, %s58
      %p150 = scmp.eq.s32.totalorder %s149, 0
      %s152 = sadd.s32 %s151, 1
      %s153 = scalar_select %p150, %s151, %s152
      %p156 = pneg %p150
      %p157 = scmp.eq.s32.totalorder %s36, 7
      %p158 = por %p156, %p157
      %p159 = scmp.ne.s32.totalorder %s151, %s154
      %p160 = scmp.eq.s32.totalorder %s36, 0
      %p161 = por %p159, %p160
      %p162 = scmp.ne.s32.totalorder %s151, %s154
      %p163 = scmp.eq.s32.totalorder %s41, 7
      %p164 = por %p162, %p163
      %p165 = scmp.ne.s32.totalorder %s154, %s155
      %p166 = scmp.eq.s32.totalorder %s41, 0
      %p167 = por %p165, %p166
      %p168 = scmp.ne.s32.totalorder %s154, %s155
      %p169 = scmp.eq.s32.totalorder %s42, 7
      %p170 = por %p168, %p169
      %p172 = scmp.ne.s32.totalorder %s155, %s171
      %p173 = scmp.eq.s32.totalorder %s42, 0
      %p174 = por %p172, %p173
      %s175 = ssub.s32 %s45, %s54
      %p176 = scmp.eq.s32.totalorder %s175, 0
      %s178 = sadd.s32 %s177, 1
      %s179 = scalar_select %p176, %s177, %s178
      %p182 = pneg %p176
      %p183 = scmp.eq.s32.totalorder %s36, 7
      %p184 = por %p182, %p183
      %p185 = scmp.ne.s32.totalorder %s177, %s180
      %p186 = scmp.eq.s32.totalorder %s36, 0
      %p187 = por %p185, %p186
      %p188 = scmp.ne.s32.totalorder %s177, %s180
      %p189 = scmp.eq.s32.totalorder %s41, 7
      %p190 = por %p188, %p189
      %p191 = scmp.ne.s32.totalorder %s180, %s181
      %p192 = scmp.eq.s32.totalorder %s41, 0
      %p193 = por %p191, %p192
      %p194 = scmp.ne.s32.totalorder %s180, %s181
      %p195 = scmp.eq.s32.totalorder %s42, 7
      %p196 = por %p194, %p195
      %p198 = scmp.ne.s32.totalorder %s181, %s197
      %p199 = scmp.eq.s32.totalorder %s42, 0
      %p200 = por %p198, %p199
      %s201 = ssub.s32 %s45, %s54
      %p202 = scmp.eq.s32.totalorder %s201, 0
      %s204 = sadd.s32 %s203, 1
      %s205 = scalar_select %p202, %s203, %s204
      %p208 = pneg %p202
      %p209 = scmp.eq.s32.totalorder %s36, 7
      %p210 = por %p208, %p209
      %p211 = scmp.ne.s32.totalorder %s203, %s206
      %p212 = scmp.eq.s32.totalorder %s36, 0
      %p213 = por %p211, %p212
      %p214 = scmp.ne.s32.totalorder %s203, %s206
      %p215 = scmp.eq.s32.totalorder %s41, 7
      %p216 = por %p214, %p215
      %p217 = scmp.ne.s32.totalorder %s206, %s207
      %p218 = scmp.eq.s32.totalorder %s41, 0
      %p219 = por %p217, %p218
      %p220 = scmp.ne.s32.totalorder %s206, %s207
      %p221 = scmp.eq.s32.totalorder %s42, 7
      %p222 = por %p220, %p221
      %p224 = scmp.ne.s32.totalorder %s207, %s223
      %p225 = scmp.eq.s32.totalorder %s42, 0
      %p226 = por %p224, %p225
      %s228 = sadd.s32 %s227, 1
      %p231 = scmp.eq.s32.totalorder %s36, 7
      %p232 = scmp.ne.s32.totalorder %s227, %s229
      %p233 = scmp.eq.s32.totalorder %s36, 0
      %p234 = por %p232, %p233
      %p235 = scmp.ne.s32.totalorder %s227, %s229
      %p236 = scmp.eq.s32.totalorder %s41, 7
      %p237 = por %p235, %p236
      %p238 = scmp.ne.s32.totalorder %s229, %s230
      %p239 = scmp.eq.s32.totalorder %s41, 0
      %p240 = por %p238, %p239
      %p241 = scmp.ne.s32.totalorder %s229, %s230
      %p242 = scmp.eq.s32.totalorder %s42, 7
      %p243 = por %p241, %p242
      %p245 = scmp.ne.s32.totalorder %s230, %s244
      %p246 = scmp.eq.s32.totalorder %s42, 0
      %p247 = por %p245, %p246
      %s249 = sadd.s32 %s248, 1
      %p252 = scmp.eq.s32.totalorder %s36, 7
      %p253 = scmp.ne.s32.totalorder %s248, %s250
      %p254 = scmp.eq.s32.totalorder %s36, 0
      %p255 = por %p253, %p254
      %p256 = scmp.ne.s32.totalorder %s248, %s250
      %p257 = scmp.eq.s32.totalorder %s41, 7
      %p258 = por %p256, %p257
      %p259 = scmp.ne.s32.totalorder %s250, %s251
      %p260 = scmp.eq.s32.totalorder %s41, 0
      %p261 = por %p259, %p260
      %p262 = scmp.ne.s32.totalorder %s250, %s251
      %p263 = scmp.eq.s32.totalorder %s42, 7
      %p264 = por %p262, %p263
      %p266 = scmp.ne.s32.totalorder %s251, %s265
      %p267 = scmp.eq.s32.totalorder %s42, 0
      %p268 = por %p266, %p267
      %s270 = sadd.s32 %s269, 1
      %p273 = scmp.eq.s32.totalorder %s36, 7
      %p274 = scmp.ne.s32.totalorder %s269, %s271
      %p275 = scmp.eq.s32.totalorder %s36, 0
      %p276 = por %p274, %p275
      %p277 = scmp.ne.s32.totalorder %s269, %s271
      %p278 = scmp.eq.s32.totalorder %s41, 7
      %p279 = por %p277, %p278
      %p280 = scmp.ne.s32.totalorder %s271, %s272
      %p281 = scmp.eq.s32.totalorder %s41, 0
      %p282 = por %p280, %p281
      %p283 = scmp.ne.s32.totalorder %s271, %s272
      %p284 = scmp.eq.s32.totalorder %s42, 7
      %p285 = por %p283, %p284
      %p287 = scmp.ne.s32.totalorder %s272, %s286
      %p288 = scmp.eq.s32.totalorder %s42, 0
      %p289 = por %p287, %p288
      %s291 = sadd.s32 %s290, 1
      %p294 = scmp.eq.s32.totalorder %s36, 7
      %p295 = scmp.ne.s32.totalorder %s290, %s292
      %p296 = scmp.eq.s32.totalorder %s36, 0
      %p297 = por %p295, %p296
      %p298 = scmp.ne.s32.totalorder %s290, %s292
      %p299 = scmp.eq.s32.totalorder %s41, 7
      %p300 = por %p298, %p299
      %p301 = scmp.ne.s32.totalorder %s292, %s293
      %p302 = scmp.eq.s32.totalorder %s41, 0
      %p303 = por %p301, %p302
      %p304 = scmp.ne.s32.totalorder %s292, %s293
      %p305 = scmp.eq.s32.totalorder %s42, 7
      %p306 = por %p304, %p305
      %p308 = scmp.ne.s32.totalorder %s293, %s307
      %p309 = scmp.eq.s32.totalorder %s42, 0
      %p310 = por %p308, %p309
      %s312 = sadd.s32 %s311, 1
      %p315 = scmp.eq.s32.totalorder %s36, 7
      %p316 = scmp.ne.s32.totalorder %s311, %s313
      %p317 = scmp.eq.s32.totalorder %s36, 0
      %p318 = por %p316, %p317
      %p319 = scmp.ne.s32.totalorder %s311, %s313
      %p320 = scmp.eq.s32.totalorder %s41, 7
      %p321 = por %p319, %p320
      %p322 = scmp.ne.s32.totalorder %s313, %s314
      %p323 = scmp.eq.s32.totalorder %s41, 0
      %p324 = por %p322, %p323
      %p325 = scmp.ne.s32.totalorder %s313, %s314
      %p326 = scmp.eq.s32.totalorder %s42, 7
      %p327 = por %p325, %p326
      %p329 = scmp.ne.s32.totalorder %s314, %s328
      %p330 = scmp.eq.s32.totalorder %s42, 0
      %p331 = por %p329, %p330
      %s333 = sadd.s32 %s332, 1
      %p336 = scmp.eq.s32.totalorder %s36, 7
      %p337 = scmp.ne.s32.totalorder %s332, %s334
      %p338 = scmp.eq.s32.totalorder %s36, 0
      %p339 = por %p337, %p338
      %p340 = scmp.ne.s32.totalorder %s332, %s334
      %p341 = scmp.eq.s32.totalorder %s41, 7
      %p342 = por %p340, %p341
      %p343 = scmp.ne.s32.totalorder %s334, %s335
      %p344 = scmp.eq.s32.totalorder %s41, 0
      %p345 = por %p343, %p344
      %p346 = scmp.ne.s32.totalorder %s334, %s335
      %p347 = scmp.eq.s32.totalorder %s42, 7
      %p348 = por %p346, %p347
      %p350 = scmp.ne.s32.totalorder %s335, %s349
      %p351 = scmp.eq.s32.totalorder %s42, 0
      %p352 = por %p350, %p351
      %s354 = sadd.s32 %s353, 1
      %p357 = scmp.eq.s32.totalorder %s36, 7
      %p358 = scmp.ne.s32.totalorder %s353, %s355
      %p359 = scmp.eq.s32.totalorder %s36, 0
      %p360 = por %p358, %p359
      %p361 = scmp.ne.s32.totalorder %s353, %s355
      %p362 = scmp.eq.s32.totalorder %s41, 7
      %p363 = por %p361, %p362
      %p364 = scmp.ne.s32.totalorder %s355, %s356
      %p365 = scmp.eq.s32.totalorder %s41, 0
      %p366 = por %p364, %p365
      %p367 = scmp.ne.s32.totalorder %s355, %s356
      %p368 = scmp.eq.s32.totalorder %s42, 7
      %p369 = por %p367, %p368
      %p371 = scmp.ne.s32.totalorder %s356, %s370
      %p372 = scmp.eq.s32.totalorder %s42, 0
      %p373 = por %p371, %p372
      %s375 = sadd.s32 %s374, 1
      %p378 = scmp.eq.s32.totalorder %s36, 7
      %p379 = scmp.ne.s32.totalorder %s374, %s376
      %p380 = scmp.eq.s32.totalorder %s36, 0
      %p381 = por %p379, %p380
      %p382 = scmp.ne.s32.totalorder %s374, %s376
      %p383 = scmp.eq.s32.totalorder %s41, 7
      %p384 = por %p382, %p383
      %p385 = scmp.ne.s32.totalorder %s376, %s377
      %p386 = scmp.eq.s32.totalorder %s41, 0
      %p387 = por %p385, %p386
      %p388 = scmp.ne.s32.totalorder %s376, %s377
      %p389 = scmp.eq.s32.totalorder %s42, 7
      %p390 = por %p388, %p389
      %p392 = scmp.ne.s32.totalorder %s377, %s391
      %p393 = scmp.eq.s32.totalorder %s42, 0
      %p394 = por %p392, %p393
      %s396 = sadd.s32 %s395, 1
      %p399 = scmp.eq.s32.totalorder %s36, 7
      %p400 = scmp.ne.s32.totalorder %s395, %s397
      %p401 = scmp.eq.s32.totalorder %s36, 0
      %p402 = por %p400, %p401
      %p403 = scmp.ne.s32.totalorder %s395, %s397
      %p404 = scmp.eq.s32.totalorder %s41, 7
      %p405 = por %p403, %p404
      %p406 = scmp.ne.s32.totalorder %s397, %s398
      %p407 = scmp.eq.s32.totalorder %s41, 0
      %p408 = por %p406, %p407
      %p409 = scmp.ne.s32.totalorder %s397, %s398
      %p410 = scmp.eq.s32.totalorder %s42, 7
      %p411 = por %p409, %p410
      %p413 = scmp.ne.s32.totalorder %s398, %s412
      %p414 = scmp.eq.s32.totalorder %s42, 0
      %p415 = por %p413, %p414
      %s417 = sadd.s32 %s416, 1
      %p420 = scmp.eq.s32.totalorder %s36, 7
      %p421 = scmp.ne.s32.totalorder %s416, %s418
      %p422 = scmp.eq.s32.totalorder %s36, 0
      %p423 = por %p421, %p422
      %p424 = scmp.ne.s32.totalorder %s416, %s418
      %p425 = scmp.eq.s32.totalorder %s41, 7
      %p426 = por %p424, %p425
      %p427 = scmp.ne.s32.totalorder %s418, %s419
      %p428 = scmp.eq.s32.totalorder %s41, 0
      %p429 = por %p427, %p428
      %p430 = scmp.ne.s32.totalorder %s418, %s419
      %p431 = scmp.eq.s32.totalorder %s42, 7
      %p432 = por %p430, %p431
      %p434 = scmp.ne.s32.totalorder %s419, %s433
      %p435 = scmp.eq.s32.totalorder %s42, 0
      %p436 = por %p434, %p435
      %s437 = smul.u32 %s43, 2
      %s438 = sadd.s32 %s437, %s44
      %s439 = smul.u32 %s62, 2
      %s440 = sadd.s32 %s439, %s58
      %s441 = ssub.s32 %s438, %s440
      %p442 = scmp.eq.s32.totalorder %s441, 0
      %s444 = sadd.s32 %s443, 1
      %s445 = scalar_select %p442, %s443, %s444
      %p448 = pneg %p442
      %p449 = scmp.eq.s32.totalorder %s36, 7
      %p450 = por %p448, %p449
      %p451 = scmp.ne.s32.totalorder %s443, %s446
      %p452 = scmp.eq.s32.totalorder %s36, 0
      %p453 = por %p451, %p452
      %p454 = scmp.ne.s32.totalorder %s443, %s446
      %p455 = scmp.eq.s32.totalorder %s41, 7
      %p456 = por %p454, %p455
      %p457 = scmp.ne.s32.totalorder %s446, %s447
      %p458 = scmp.eq.s32.totalorder %s41, 0
      %p459 = por %p457, %p458
      %p460 = scmp.ne.s32.totalorder %s446, %s447
      %p461 = scmp.eq.s32.totalorder %s42, 7
      %p462 = por %p460, %p461
      %p464 = scmp.ne.s32.totalorder %s447, %s463
      %p465 = scmp.eq.s32.totalorder %s42, 0
      %p466 = por %p464, %p465
      %p467 = scmp.le.s32.totalorder 1, %s36
      %p468 = scmp.lt.s32.totalorder %s36, 9
      %p469 = pnand %p467, %p468
      %p470 = pneg %p469
      // Predicated region
      $region9: #{tpu_custom_call.1} parent=5 // pred_check
        _
      $region10: #{tpu_custom_call.1} parent=5 // pred_check_branch
        %472 = sbr.rel (%p469) target = $region12
      $region11: #{tpu_custom_call.1} parent=5 // pred_region
        %s473 = ssub.s32 %s36, 1
        // Predicated region
        $region13: #{tpu_custom_call.1} parent=11 // pred_check
          %p474 = pneg %p240
        $region14: #{tpu_custom_call.1} parent=11 // pred_check_branch
          %476 = sbr.rel (%p474) target = $region16
        $region15: #{tpu_custom_call.1} parent=11 // pred_region
          %s478 = ssub.s32 16, 16
          %479 = vsyncadd [#allocation15], %s478
          %s481 = sshll.u32 [#allocation14], 4
          %s482 = int_to_ptr.vmem [resolvable:$true] %s481
          %484 = dma.hbm_to_vmem [thread:$0]  %s6, 16, %s482, [#allocation15]
        $region16: #{tpu_custom_call.1} parent=11 // pred_fallthru
          _
        // Predicated region
        $region17: #{tpu_custom_call.1} parent=11 // pred_check
          %p485 = pneg %p261
        $region18: #{tpu_custom_call.1} parent=11 // pred_check_branch
          %487 = sbr.rel (%p485) target = $region20
        $region19: #{tpu_custom_call.1} parent=11 // pred_region
          %s489 = ssub.s32 16, 16
          %490 = vsyncadd [#allocation15], %s489
          %s492 = sshll.u32 [#allocation16], 4
          %s493 = int_to_ptr.vmem [resolvable:$true] %s492
          %495 = dma.hbm_to_vmem [thread:$0]  %s7, 16, %s493, [#allocation15]
        $region20: #{tpu_custom_call.1} parent=11 // pred_fallthru
          _
        // Predicated region
        $region21: #{tpu_custom_call.1} parent=11 // pred_check
          %p496 = pneg %p282
        $region22: #{tpu_custom_call.1} parent=11 // pred_check_branch
          %498 = sbr.rel (%p496) target = $region24
        $region23: #{tpu_custom_call.1} parent=11 // pred_region
          %s500 = ssub.s32 1024, 1024
          %501 = vsyncadd [#allocation18], %s500
          %s502 = sshll.u32 [#allocation17], 4
          %s503 = int_to_ptr.vmem [resolvable:$true] %s502
          %508 = dma.hbm_to_vmem [thread:$0]  %s8, 1024, %s503, [#allocation18], 128, 128, 8
        $region24: #{tpu_custom_call.1} parent=11 // pred_fallthru
          _
        // Predicated region
        $region25: #{tpu_custom_call.1} parent=11 // pred_check
          %p509 = pneg %p303
        $region26: #{tpu_custom_call.1} parent=11 // pred_check_branch
          %511 = sbr.rel (%p509) target = $region28
        $region27: #{tpu_custom_call.1} parent=11 // pred_region
          _
        $region28: #{tpu_custom_call.1} parent=11 // pred_fallthru
          _
        // Predicated region
        $region29: #{tpu_custom_call.1} parent=11 // pred_check
          %p512 = pneg %p324
        $region30: #{tpu_custom_call.1} parent=11 // pred_check_branch
          %514 = sbr.rel (%p512) target = $region32
        $region31: #{tpu_custom_call.1} parent=11 // pred_region
          _
        $region32: #{tpu_custom_call.1} parent=11 // pred_fallthru
          _
        // Predicated region
        $region33: #{tpu_custom_call.1} parent=11 // pred_check
          %p515 = pneg %p345
        $region34: #{tpu_custom_call.1} parent=11 // pred_check_branch
          %517 = sbr.rel (%p515) target = $region36
        $region35: #{tpu_custom_call.1} parent=11 // pred_region
          _
        $region36: #{tpu_custom_call.1} parent=11 // pred_fallthru
          _
        // Predicated region
        $region37: #{tpu_custom_call.1} parent=11 // pred_check
          %p518 = pneg %p366
        $region38: #{tpu_custom_call.1} parent=11 // pred_check_branch
          %520 = sbr.rel (%p518) target = $region40
        $region39: #{tpu_custom_call.1} parent=11 // pred_region
          _
        $region40: #{tpu_custom_call.1} parent=11 // pred_fallthru
          _
        // Predicated region
        $region41: #{tpu_custom_call.1} parent=11 // pred_check
          %p521 = pneg %p387
        $region42: #{tpu_custom_call.1} parent=11 // pred_check_branch
          %523 = sbr.rel (%p521) target = $region44
        $region43: #{tpu_custom_call.1} parent=11 // pred_region
          _
        $region44: #{tpu_custom_call.1} parent=11 // pred_fallthru
          _
        // Predicated region
        $region45: #{tpu_custom_call.1} parent=11 // pred_check
          %p524 = pneg %p408
        $region46: #{tpu_custom_call.1} parent=11 // pred_check_branch
          %526 = sbr.rel (%p524) target = $region48
        $region47: #{tpu_custom_call.1} parent=11 // pred_region
          _
        $region48: #{tpu_custom_call.1} parent=11 // pred_fallthru
          _
        // Predicated region
        $region49: #{tpu_custom_call.1} parent=11 // pred_check
          %p527 = pneg %p429
        $region50: #{tpu_custom_call.1} parent=11 // pred_check_branch
          %529 = sbr.rel (%p527) target = $region52
        $region51: #{tpu_custom_call.1} parent=11 // pred_region
          _
        $region52: #{tpu_custom_call.1} parent=11 // pred_fallthru
          _
      $region12: #{tpu_custom_call.1} parent=5 // pred_fallthru
        _
      %p530 = scmp.lt.s32.totalorder %s36, 8
      // Predicated region
      $region53: #{tpu_custom_call.1} parent=5 // pred_check
        %p531 = pneg %p530
      $region54: #{tpu_custom_call.1} parent=5 // pred_check_branch
        %533 = sbr.rel (%p531) target = $region56
      $region55: #{tpu_custom_call.1} parent=5 // pred_region
        // Predicated region
        $region57: #{tpu_custom_call.1} parent=55 // pred_check
          %p534 = pneg %p79
        $region58: #{tpu_custom_call.1} parent=55 // pred_check_branch
          %536 = sbr.rel (%p534) target = $region60
        $region59: #{tpu_custom_call.1} parent=55 // pred_region
          %s537 = smul.u32 %s43, 2
          %s538 = sadd.s32 %s537, %s44
          %s539 = smul.u32 2, %s538
          %p540 = scmp.lt.s32.totalorder %s539, 7
          %s541 = scalar_select %p540, %s539, 7
          %s542 = smul.addr %s541, 8
          %s543 = scalar_lea.vmem %s0, %s542
          %s544 = smul.u32 %s43, 2
          %s545 = sadd.s32 %s544, %s44
          %s546 = smul.u32 2, %s545
        $region60: #{tpu_custom_call.1} parent=55 // pred_fallthru
          _
        // Predicated region
        $region61: #{tpu_custom_call.1} parent=55 // pred_check
          %p547 = pneg %p109
        $region62: #{tpu_custom_call.1} parent=55 // pred_check_branch
          %549 = sbr.rel (%p547) target = $region64
        $region63: #{tpu_custom_call.1} parent=55 // pred_region
          %s550 = sand.u32 %s99, 1
          %s551 = scalar_lea.sflag [#allocation6], %s550
          %s552 = sand.u32 %s99, 1
          %s553 = smul.addr %s552, 16
          %s554 = scalar_lea.vmem [#allocation5], %s553
          %s555 = smul.u32 %s43, 2
          %s556 = sadd.s32 %s555, %s45
          %s557 = smul.u32 2, %s556
          %s559 = ssub.s32 256, 256
          %560 = vsyncadd %s551, %s559
          %s561 = smul.addr %s557, 128
          %s562 = scalar_lea.hbm %s1, %s561
          %s563 = sshll.u32 %s554, 4
          %s564 = int_to_ptr.vmem [resolvable:$true] %s563
          %569 = dma.hbm_to_vmem [thread:$0]  %s562, 256, %s564, %s551, 128, 128, 8
        $region64: #{tpu_custom_call.1} parent=55 // pred_fallthru
          _
        // Predicated region
        $region65: #{tpu_custom_call.1} parent=55 // pred_check
          %p570 = pneg %p135
        $region66: #{tpu_custom_call.1} parent=55 // pred_check_branch
          %572 = sbr.rel (%p570) target = $region68
        $region67: #{tpu_custom_call.1} parent=55 // pred_region
          %s573 = sand.u32 %s36, 1
          %s574 = scalar_lea.sflag [#allocation9], %s573
          %s575 = sand.u32 %s125, 1
          %s576 = smul.addr %s575, 16
          %s577 = scalar_lea.vmem [#allocation8], %s576
          %s578 = smul.u32 2, %s44
          %s580 = ssub.s32 256, 256
          %581 = vsyncadd %s574, %s580
          %s582 = smul.addr %s578, 128
          %s583 = scalar_lea.hbm %s2, %s582
          %s584 = sshll.u32 %s577, 4
          %s585 = int_to_ptr.vmem [resolvable:$true] %s584
          %590 = dma.hbm_to_vmem [thread:$0]  %s583, 256, %s585, %s574, 128, 128, 8
        $region68: #{tpu_custom_call.1} parent=55 // pred_fallthru
          _
        // Predicated region
        $region69: #{tpu_custom_call.1} parent=55 // pred_check
          %p591 = pneg %p161
        $region70: #{tpu_custom_call.1} parent=55 // pred_check_branch
          %593 = sbr.rel (%p591) target = $region72
        $region71: #{tpu_custom_call.1} parent=55 // pred_region
          %s594 = sand.u32 %s36, 1
          %s595 = scalar_lea.sflag [#allocation9], %s594
          %s596 = sand.u32 %s151, 1
          %s597 = smul.addr %s596, 16
          %s598 = scalar_lea.vmem [#allocation10], %s597
          %s599 = smul.u32 2, %s44
          %s601 = ssub.s32 256, 256
          %602 = vsyncadd %s595, %s601
          %s603 = smul.addr %s599, 128
          %s604 = scalar_lea.hbm %s3, %s603
          %s605 = sshll.u32 %s598, 4
          %s606 = int_to_ptr.vmem [resolvable:$true] %s605
          %611 = dma.hbm_to_vmem [thread:$0]  %s604, 256, %s606, %s595, 128, 128, 8
        $region72: #{tpu_custom_call.1} parent=55 // pred_fallthru
          _
        // Predicated region
        $region73: #{tpu_custom_call.1} parent=55 // pred_check
          %p612 = pneg %p187
        $region74: #{tpu_custom_call.1} parent=55 // pred_check_branch
          %614 = sbr.rel (%p612) target = $region76
        $region75: #{tpu_custom_call.1} parent=55 // pred_region
          %s615 = sand.u32 %s36, 1
          %s616 = scalar_lea.sflag [#allocation12], %s615
          %s617 = sand.u32 %s177, 1
          %s618 = smul.addr %s617, 16
          %s619 = scalar_lea.vmem [#allocation11], %s618
          %s620 = smul.u32 2, %s45
          %s622 = ssub.s32 256, 256
          %623 = vsyncadd %s616, %s622
          %s624 = smul.addr %s620, 128
          %s625 = scalar_lea.hbm %s4, %s624
          %s626 = sshll.u32 %s619, 4
          %s627 = int_to_ptr.vmem [resolvable:$true] %s626
          %632 = dma.hbm_to_vmem [thread:$0]  %s625, 256, %s627, %s616, 128, 128, 8
        $region76: #{tpu_custom_call.1} parent=55 // pred_fallthru
          _
        // Predicated region
        $region77: #{tpu_custom_call.1} parent=55 // pred_check
          %p633 = pneg %p213
        $region78: #{tpu_custom_call.1} parent=55 // pred_check_branch
          %635 = sbr.rel (%p633) target = $region80
        $region79: #{tpu_custom_call.1} parent=55 // pred_region
          %s636 = sand.u32 %s36, 1
          %s637 = scalar_lea.sflag [#allocation12], %s636
          %s638 = sand.u32 %s203, 1
          %s639 = smul.addr %s638, 16
          %s640 = scalar_lea.vmem [#allocation13], %s639
          %s641 = smul.u32 2, %s45
          %s643 = ssub.s32 256, 256
          %644 = vsyncadd %s637, %s643
          %s645 = smul.addr %s641, 128
          %s646 = scalar_lea.hbm %s5, %s645
          %s647 = sshll.u32 %s640, 4
          %s648 = int_to_ptr.vmem [resolvable:$true] %s647
          %653 = dma.hbm_to_vmem [thread:$0]  %s646, 256, %s648, %s637, 128, 128, 8
        $region80: #{tpu_custom_call.1} parent=55 // pred_fallthru
          _
      $region56: #{tpu_custom_call.1} parent=5 // pred_fallthru
        _
      %p654 = scmp.le.s32.totalorder 1, %s36
      %p655 = scmp.lt.s32.totalorder %s36, 9
      %p656 = pnand %p654, %p655
      %p657 = pneg %p656
      // Predicated region
      $region81: #{tpu_custom_call.1} parent=5 // pred_check
        _
      $region82: #{tpu_custom_call.1} parent=5 // pred_check_branch
        %659 = sbr.rel (%p656) target = $region84
      $region83: #{tpu_custom_call.1} parent=5 // pred_region
        %s660 = ssub.s32 %s36, 1
        %s661 = sand.u32 %s102, 1
        %s662 = scalar_lea.sflag [#allocation6], %s661
        %s663 = sand.u32 %s102, 1
        %s664 = smul.addr %s663, 16
        %s665 = scalar_lea.vmem [#allocation5], %s664
        // Predicated region
        $region85: #{tpu_custom_call.1} parent=83 // pred_check
          %p666 = pneg %p115
        $region86: #{tpu_custom_call.1} parent=83 // pred_check_branch
          %668 = sbr.rel (%p666) target = $region88
        $region87: #{tpu_custom_call.1} parent=83 // pred_region
          %669 = dma.done %s662, 256
        $region88: #{tpu_custom_call.1} parent=83 // pred_fallthru
          _
        %s670 = sand.u32 %s41, 1
        %s671 = scalar_lea.sflag [#allocation9], %s670
        %s672 = sand.u32 %s128, 1
        %s673 = smul.addr %s672, 16
        %s674 = scalar_lea.vmem [#allocation8], %s673
        // Predicated region
        $region89: #{tpu_custom_call.1} parent=83 // pred_check
          %p675 = pneg %p141
        $region90: #{tpu_custom_call.1} parent=83 // pred_check_branch
          %677 = sbr.rel (%p675) target = $region92
        $region91: #{tpu_custom_call.1} parent=83 // pred_region
          %678 = dma.done %s671, 256
        $region92: #{tpu_custom_call.1} parent=83 // pred_fallthru
          _
        %s679 = sand.u32 %s41, 1
        %s680 = scalar_lea.sflag [#allocation9], %s679
        %s681 = sand.u32 %s154, 1
        %s682 = smul.addr %s681, 16
        %s683 = scalar_lea.vmem [#allocation10], %s682
        // Predicated region
        $region93: #{tpu_custom_call.1} parent=83 // pred_check
          %p684 = pneg %p167
        $region94: #{tpu_custom_call.1} parent=83 // pred_check_branch
          %686 = sbr.rel (%p684) target = $region96
        $region95: #{tpu_custom_call.1} parent=83 // pred_region
          %687 = dma.done %s680, 256
        $region96: #{tpu_custom_call.1} parent=83 // pred_fallthru
          _
        %s688 = sand.u32 %s41, 1
        %s689 = scalar_lea.sflag [#allocation12], %s688
        %s690 = sand.u32 %s180, 1
        %s691 = smul.addr %s690, 16
        %s692 = scalar_lea.vmem [#allocation11], %s691
        // Predicated region
        $region97: #{tpu_custom_call.1} parent=83 // pred_check
          %p693 = pneg %p193
        $region98: #{tpu_custom_call.1} parent=83 // pred_check_branch
          %695 = sbr.rel (%p693) target = $region100
        $region99: #{tpu_custom_call.1} parent=83 // pred_region
          %696 = dma.done %s689, 256
        $region100: #{tpu_custom_call.1} parent=83 // pred_fallthru
          _
        %s697 = sand.u32 %s41, 1
        %s698 = scalar_lea.sflag [#allocation12], %s697
        %s699 = sand.u32 %s206, 1
        %s700 = smul.addr %s699, 16
        %s701 = scalar_lea.vmem [#allocation13], %s700
        // Predicated region
        $region101: #{tpu_custom_call.1} parent=83 // pred_check
          %p702 = pneg %p219
        $region102: #{tpu_custom_call.1} parent=83 // pred_check_branch
          %704 = sbr.rel (%p702) target = $region104
        $region103: #{tpu_custom_call.1} parent=83 // pred_region
          %705 = dma.done %s698, 256
        $region104: #{tpu_custom_call.1} parent=83 // pred_fallthru
          _
        // Predicated region
        $region105: #{tpu_custom_call.1} parent=83 // pred_check
          %p706 = pneg %p240
        $region106: #{tpu_custom_call.1} parent=83 // pred_check_branch
          %708 = sbr.rel (%p706) target = $region108
        $region107: #{tpu_custom_call.1} parent=83 // pred_region
          %709 = dma.done [#allocation15], 16
        $region108: #{tpu_custom_call.1} parent=83 // pred_fallthru
          _
        // Predicated region
        $region109: #{tpu_custom_call.1} parent=83 // pred_check
          %p710 = pneg %p261
        $region110: #{tpu_custom_call.1} parent=83 // pred_check_branch
          %712 = sbr.rel (%p710) target = $region112
        $region111: #{tpu_custom_call.1} parent=83 // pred_region
          %713 = dma.done [#allocation15], 16
        $region112: #{tpu_custom_call.1} parent=83 // pred_fallthru
          _
        // Predicated region
        $region113: #{tpu_custom_call.1} parent=83 // pred_check
          %p714 = pneg %p282
        $region114: #{tpu_custom_call.1} parent=83 // pred_check_branch
          %716 = sbr.rel (%p714) target = $region116
        $region115: #{tpu_custom_call.1} parent=83 // pred_region
          %717 = dma.done [#allocation18], 1024
        $region116: #{tpu_custom_call.1} parent=83 // pred_fallthru
          _
        %s718 = smul.u32 %s46, 2
        %s719 = sadd.s32 %s718, %s47
        %s720 = smul.u32 2, %s719
        %p721 = scmp.lt.s32.totalorder %s720, 7
        %s722 = scalar_select %p721, %s720, 7
        %s723 = smul.addr %s722, 8
        %s724 = scalar_lea.vmem %s0, %s723
        %p725 = pneg %p85
        %p726 = pneg %p82
        %s727 = sand.u32 %s102, 1
        %s728 = scalar_lea.sflag [#allocation6], %s727
        %s729 = sand.u32 %s102, 1
        %s730 = smul.addr %s729, 16
        %s731 = scalar_lea.vmem [#allocation5], %s730
        %p732 = pneg %p115
        %p733 = pneg %p112
        %s734 = sand.u32 %s41, 1
        %s735 = scalar_lea.sflag [#allocation9], %s734
        %s736 = sand.u32 %s128, 1
        %s737 = smul.addr %s736, 16
        %s738 = scalar_lea.vmem [#allocation8], %s737
        %p739 = pneg %p141
        %p740 = pneg %p138
        %s741 = sand.u32 %s41, 1
        %s742 = scalar_lea.sflag [#allocation9], %s741
        %s743 = sand.u32 %s154, 1
        %s744 = smul.addr %s743, 16
        %s745 = scalar_lea.vmem [#allocation10], %s744
        %p746 = pneg %p167
        %p747 = pneg %p164
        %s748 = sand.u32 %s41, 1
        %s749 = scalar_lea.sflag [#allocation12], %s748
        %s750 = sand.u32 %s180, 1
        %s751 = smul.addr %s750, 16
        %s752 = scalar_lea.vmem [#allocation11], %s751
        %p753 = pneg %p193
        %p754 = pneg %p190
        %s755 = sand.u32 %s41, 1
        %s756 = scalar_lea.sflag [#allocation12], %s755
        %s757 = sand.u32 %s206, 1
        %s758 = smul.addr %s757, 16
        %s759 = scalar_lea.vmem [#allocation13], %s758
        %p760 = pneg %p219
        %p761 = pneg %p216
        %p762 = pneg %p240
        %p763 = pneg %p237
        %p764 = pneg %p261
        %p765 = pneg %p258
        %p766 = pneg %p282
        %p767 = pneg %p279
        %p768 = pneg %p303
        %p769 = pneg %p300
        %p770 = pneg %p324
        %p771 = pneg %p321
        %p772 = pneg %p345
        %p773 = pneg %p342
        %p774 = pneg %p366
        %p775 = pneg %p363
        %p776 = pneg %p387
        %p777 = pneg %p384
        %p778 = pneg %p408
        %p779 = pneg %p405
        %p780 = pneg %p429
        %p781 = pneg %p426
        %p782 = pneg %p459
        %p783 = pneg %p456
        %s784 = sand.u32 %s446, 1
        %s785 = scalar_lea.sflag [#allocation7], %s784
        %s786 = sand.u32 %s446, 1
        %s787 = smul.addr %s786, 16
        %s788 = scalar_lea.vmem [#allocation19], %s787
        %s789 = smul.u32 %s46, 2
        %s790 = sadd.s32 %s789, %s47
        %s791 = smul.u32 2, %s790
        %p792 = scmp.lt.s32.totalorder %s791, 7
        %s793 = scalar_select %p792, %s791, 7
        %s794 = smul.addr %s793, 8
        %s795 = scalar_lea.vmem %s0, %s794
        %s796 = smul.u32 %s46, 2
        %s797 = sadd.s32 %s796, %s47
        %s798 = smul.u32 2, %s797
        %s799 = smul.u32 %s46, 2
        %s800 = sadd.s32 %s799, %s48
        %s801 = smul.u32 2, %s800
        %s802 = smul.u32 2, %s47
        %s803 = smul.u32 2, %s47
        %s804 = smul.u32 2, %s48
        %s805 = smul.u32 2, %s48
        %s806 = smul.u32 %s46, 2
        %s807 = sadd.s32 %s806, %s47
        %s808 = smul.u32 2, %s807
        %p810 = scmp.eq.s32.totalorder %s48, 0
        // Predicated region
        $region117: #{tpu_custom_call.1} parent=83 // pred_check
          %p811 = pneg %p810
        $region118: #{tpu_custom_call.1} parent=83 // pred_check_branch
          %813 = sbr.rel (%p811) target = $region120
        $region119: #{tpu_custom_call.1} parent=83 // pred_region
          %v814 = vld [vmem:[%s795] sm:$0xff]
          %v815 = vld [vmem:[%s795 + $0x8] sm:$0xff]
          %v816 = vld [vmem:[#allocation14] sm:$0x1]
          %v817 = vld [vmem:[#allocation16] sm:$0x1]
          %vm818 = vcmask 523264
          %v819 = vsel %vm818, %v814, 0.0
          %820 = vadd.xlane.f32.xlu0 %v819
          %v821 = vpop.xlane.xlu0 %820
          %v822 = vsel %vm818, %v815, 0.0
          %823 = vadd.xlane.f32.xlu0 %v822
          %v824 = vpop.xlane.xlu0 %823
          %v825 = vrcp.pop 64.0
          %v826 = vmul.f32 %v821, %v825
          %v827 = vmul.f32 %v824, %v825
          %v828 = vsub.f32 %v814, %v826
          %v829 = vsub.f32 %v815, %v827
          %v830 = vmul.f32 %v828, %v828
          %v831 = vmul.f32 %v829, %v829
          %v832 = vsel %vm818, %v830, 0.0
          %833 = vadd.xlane.f32.xlu0 %v832
          %v834 = vpop.xlane.xlu0 %833
          %v835 = vsel %vm818, %v831, 0.0
          %836 = vadd.xlane.f32.xlu0 %v835
          %v837 = vpop.xlane.xlu0 %836
          %v838 = vmul.f32 %v834, %v825
          %v839 = vmul.f32 %v837, %v825
          %v840 = vadd.f32 %v838, 1e-05
          %v841 = vadd.f32 %v839, 1e-05
          %v842 = vrsqrt.pop %v840
          %v843 = vrsqrt.pop %v841
          %v844 = vmul.f32 %v828, %v842
          %v845 = vmul.f32 %v829, %v843
          %v847 = vlaneseq
          %v848 = vshrl.u32 %v847, 7
          %v849 = vsub.s32 0, %v848
          %v850 = vrot.slane %v816, %v849
          %v852 = vmul.f32 %v844, %v850
          %v853 = vmul.f32 %v845, %v850
          %v855 = vlaneseq
          %v856 = vshrl.u32 %v855, 7
          %v857 = vsub.s32 0, %v856
          %v858 = vrot.slane %v817, %v857
          %v860 = vadd.f32 %v852, %v858
          %v861 = vadd.f32 %v853, %v858
          %v862 = vpack.c.bf16 %v861, %v860
          %v863 = vld [vmem:[#allocation17] sm:$0xff]
          %v864 = vld [vmem:[#allocation17 + $0x8] sm:$0xff]
          %v865 = vld [vmem:[#allocation17 + $0x10] sm:$0xff]
          %v866 = vld [vmem:[#allocation17 + $0x18] sm:$0xff]
          %v867 = vld [vmem:[#allocation17 + $0x20] sm:$0xff]
          %v868 = vld [vmem:[#allocation17 + $0x28] sm:$0xff]
          %v869 = vld [vmem:[#allocation17 + $0x30] sm:$0xff]
          %v870 = vld [vmem:[#allocation17 + $0x38] sm:$0xff]
          %v871 = vld [vmem:[%s9] sm:$0x3]
          %v873 = vlaneseq
          %v874 = vshrl.u32 %v873, 7
          %v875 = vsub.s32 0, %v874
          %v876 = vrot.slane %v871, %v875
          %v877 = vlaneseq
          %v878 = vshrl.u32 %v877, 7
          %v879 = vsub.s32 1, %v878
          %v880 = vrot.slane %v871, %v879
          %v891 = vunpack.c.l.b16 %v863
          %v892 = vunpack.c.h.b16 %v863
          %v893 = vunpack.c.l.b16 %v864
          %v894 = vunpack.c.h.b16 %v864
          %v895 = vunpack.c.l.b16 %v865
          %v896 = vunpack.c.h.b16 %v865
          %v897 = vunpack.c.l.b16 %v866
          %v898 = vunpack.c.h.b16 %v866
          %v899 = vunpack.c.l.b16 %v867
          %v900 = vunpack.c.h.b16 %v867
          %v901 = vunpack.c.l.b16 %v868
          %v902 = vunpack.c.h.b16 %v868
          %v903 = vunpack.c.l.b16 %v869
          %v904 = vunpack.c.h.b16 %v869
          %v905 = vunpack.c.l.b16 %v870
          %v906 = vunpack.c.h.b16 %v870
          %v907 = vpack.c.b16 %v893, %v891
          %v908 = vpack.c.b16 %v894, %v892
          %v909 = vpack.c.b16 %v897, %v895
          %v910 = vpack.c.b16 %v898, %v896
          %v911 = vpack.c.b16 %v901, %v899
          %v912 = vpack.c.b16 %v902, %v900
          %v913 = vpack.c.b16 %v905, %v903
          %v914 = vpack.c.b16 %v906, %v904
          %v924 = vsel %vm818, %v862, 0
          %926 = vmatprep.subr.bf16.mxu0 %v908
          %927 = vmatpush1.bf16.msra.mxu0 %v907
          %928 = vmatprep.subr.bf16.mxu0 %v910
          %929 = vmatpush1.bf16.msra.mxu0 %v909
          %930 = vmatprep.subr.bf16.mxu0 %v912
          %931 = vmatpush1.bf16.msra.mxu0 %v911
          %932 = vmatprep.subr.bf16.mxu0 %v914
          %933 = vmatpush1.bf16.msra.mxu0 %v913
          %934 = vmatprep.subr.bf16.mxu0 0
          %935 = vmatpush1.bf16.msra.mxu0 0
          %936 = vmatprep.subr.bf16.mxu0 0
          %937 = vmatpush1.bf16.msra.mxu0 0
          %938 = vmatprep.subr.bf16.mxu0 0
          %939 = vmatpush1.bf16.msra.mxu0 0
          %940 = vmatprep.subr.bf16.mxu0 0
          %941 = vmatpush1.bf16.msra.mxu0 0
          %942 = vmatprep.subr.bf16.mxu0 0
          %943 = vmatpush1.bf16.msra.mxu0 0
          %944 = vmatprep.subr.bf16.mxu0 0
          %945 = vmatpush1.bf16.msra.mxu0 0
          %946 = vmatprep.subr.bf16.mxu0 0
          %947 = vmatpush1.bf16.msra.mxu0 0
          %948 = vmatprep.subr.bf16.mxu0 0
          %949 = vmatpush1.bf16.msra.mxu0 0
          %950 = vmatprep.subr.bf16.mxu0 0
          %951 = vmatpush1.bf16.msra.mxu0 0
          %952 = vmatprep.subr.bf16.mxu0 0
          %953 = vmatpush1.bf16.msra.mxu0 0
          %954 = vmatprep.subr.bf16.mxu0 0
          %955 = vmatpush1.bf16.msra.mxu0 0
          %956 = vmatprep.subr.bf16.mxu0 0
          %957 = vmatpush1.bf16.msra.mxu0 0
          %958 = vmatprep.mubr.bf16.mxu0 0
          %959 = vmatmul.mubr.bf16.gmra.mrb[0].mxu0 %v924
          %v960 = vpop.f32.mrb[0].mxu0
          %v961 = vadd.f32 %v876, %v960
          %v962 = vpop.f32.mrb[0].mxu0
          %v963 = vadd.f32 %v880, %v962
          %v964 = vpop.f32.mrb[0].mxu0
          %v965 = vadd.f32 %v876, %v964
          %v966 = vpop.f32.mrb[0].mxu0
          %v967 = vadd.f32 %v880, %v966
          %968 = vdwg.mxu0
          %v969 = vld [vmem:[%s674] sm:$0xff]
          %v970 = vld [vmem:[%s674 + $0x8] sm:$0xff]
          %v971 = vld [vmem:[%s683] sm:$0xff]
          %v972 = vld [vmem:[%s683 + $0x8] sm:$0xff]
          %v973 = vlaneseq
          %v974 = vand.u32 %v973, 127
          %vm975 = vcmask 1048064
          %976 = vrot.lane.b32.xlu0 %v961, 64
          %v977 = vpop.permute.xlu0 %976
          %v978 = vsel %vm975, %v977, %v961
          %979 = vrot.lane.b32.xlu0 %v965, 64
          %v980 = vpop.permute.xlu0 %979
          %v981 = vsel %vm975, %v980, %v965
          %982 = vrot.lane.b32.xlu0 %v978, 64
          %v983 = vpop.permute.xlu0 %982
          %984 = vrot.lane.b32.xlu0 %v981, 64
          %v985 = vpop.permute.xlu0 %984
          %v986 = vsel %vm975, %v983, %v961
          %v987 = vsel %vm975, %v985, %v965
          %vm988 = vcmp.lt.s32.totalorder %v974, 0
          %v989 = vsub.s32 0, %v974
          %v990 = vsel %vm988, %v989, %v974
          %v991 = vshrl.u32 %v990, 1
          %v992 = vand.u32 %v990, 1
          %v993 = vsub.s32 0, %v992
          %v994 = vsel %vm988, %v993, %v992
          %vm995 = vcmp.ne.s32.totalorder %v994, 0
          %vm996 = vcmp.lt.s32.totalorder %v994, 0
          %vm997 = vmand %vm996, %vm995
          %v998 = vadd.s32 %v994, 2
          %v999 = vsel %vm997, %v998, %v994
          %vm1000 = vcmp.eq.s32.totalorder %v999, 0
          %1003 = vrot.lane.b32.xlu0 %v986, 127
          %v1004 = vpop.permute.xlu0 %1003
          %1005 = vrot.lane.b32.xlu0 %v987, 127
          %v1006 = vpop.permute.xlu0 %1005
          %1009 = vrot.lane.b32.xlu0 %v986, 65
          %v1010 = vpop.permute.xlu0 %1009
          %1011 = vrot.lane.b32.xlu0 %v987, 65
          %v1012 = vpop.permute.xlu0 %1011
          %v1015 = vsel %vm1000, %v1004, %v1010
          %v1016 = vsel %vm1000, %v1006, %v1012
          %v1017 = vmul.f32 %v961, %v969
          %v1018 = vmul.f32 %v965, %v970
          %v1019 = vmul.f32 %v1015, %v971
          %v1020 = vmul.f32 %v1016, %v972
          %v1021 = vadd.f32 %v1017, %v1019
          %v1022 = vadd.f32 %v1018, %v1020
          %v1023 = vpack.c.bf16 %v1022, %v1021
          %1024 = vst.msk [vmem:[#allocation2] sm:$0xff] %vm818, %v1023
          %v1025 = vxor.u32 %v961, 2147483648
          %v1026 = vxor.u32 %v963, 2147483648
          %v1027 = vxor.u32 %v965, 2147483648
          %v1028 = vxor.u32 %v967, 2147483648
          %v1029 = vmul.f32 %v1025, 1.442695
          %v1030 = vpow.pop %v1029
          %v1031 = vmul.f32 %v1026, 1.442695
          %v1032 = vpow.pop %v1031
          %v1033 = vmul.f32 %v1027, 1.442695
          %v1034 = vpow.pop %v1033
          %v1035 = vmul.f32 %v1028, 1.442695
          %v1036 = vpow.pop %v1035
          %v1037 = vadd.f32 %v1030, 1.0
          %v1038 = vadd.f32 %v1032, 1.0
          %v1039 = vadd.f32 %v1034, 1.0
          %v1040 = vadd.f32 %v1036, 1.0
          %v1041 = vrcp.pop %v1037
          %v1042 = vmul.f32 1.0, %v1041
          %v1043 = vrcp.pop %v1038
          %v1044 = vmul.f32 1.0, %v1043
          %v1045 = vrcp.pop %v1039
          %v1046 = vmul.f32 1.0, %v1045
          %v1047 = vrcp.pop %v1040
          %v1048 = vmul.f32 1.0, %v1047
          %v1049 = vmul.f32 %v961, %v1042
          %v1050 = vmul.f32 %v963, %v1044
          %v1051 = vmul.f32 %v965, %v1046
          %v1052 = vmul.f32 %v967, %v1048
          %1057 = vrot.lane.b32.xlu0 %v1049, 64
          %v1058 = vpop.permute.xlu0 %1057
          %1059 = vrot.lane.b32.xlu0 %v1050, 64
          %v1060 = vpop.permute.xlu0 %1059
          %1061 = vrot.lane.b32.xlu0 %v1051, 64
          %v1062 = vpop.permute.xlu0 %1061
          %1063 = vrot.lane.b32.xlu0 %v1052, 64
          %v1064 = vpop.permute.xlu0 %1063
          %v1065 = vsel %vm818, %v1058, %v1060
          %v1066 = vsel %vm818, %v1062, %v1064
          %1069 = vst [vmem:[#allocation3] sm:$0xff] %v1065
          %1070 = vst [vmem:[#allocation3 + $0x8] sm:$0xff] %v1066
          %1071 = vst [vmem:[#allocation4] sm:$0xff] 0.0
          %1072 = vst [vmem:[#allocation4 + $0x8] sm:$0xff] 0.0
        $region120: #{tpu_custom_call.1} parent=83 // pred_fallthru
          _
        %v1073 = vld [vmem:[%s665] sm:$0xff]
        %v1074 = vld [vmem:[%s665 + $0x8] sm:$0xff]
        %v1075 = vld [vmem:[#allocation14] sm:$0x1]
        %v1076 = vld [vmem:[#allocation16] sm:$0x1]
        %vm1077 = vcmask 523264
        %v1078 = vsel %vm1077, %v1073, 0.0
        %1079 = vadd.xlane.f32.xlu0 %v1078
        %v1080 = vpop.xlane.xlu0 %1079
        %v1081 = vsel %vm1077, %v1074, 0.0
        %1082 = vadd.xlane.f32.xlu0 %v1081
        %v1083 = vpop.xlane.xlu0 %1082
        %v1084 = vrcp.pop 64.0
        %v1085 = vmul.f32 %v1080, %v1084
        %v1086 = vmul.f32 %v1083, %v1084
        %v1087 = vsub.f32 %v1073, %v1085
        %v1088 = vsub.f32 %v1074, %v1086
        %v1089 = vmul.f32 %v1087, %v1087
        %v1090 = vmul.f32 %v1088, %v1088
        %v1091 = vsel %vm1077, %v1089, 0.0
        %1092 = vadd.xlane.f32.xlu0 %v1091
        %v1093 = vpop.xlane.xlu0 %1092
        %v1094 = vsel %vm1077, %v1090, 0.0
        %1095 = vadd.xlane.f32.xlu0 %v1094
        %v1096 = vpop.xlane.xlu0 %1095
        %v1097 = vmul.f32 %v1093, %v1084
        %v1098 = vmul.f32 %v1096, %v1084
        %v1099 = vadd.f32 %v1097, 1e-05
        %v1100 = vadd.f32 %v1098, 1e-05
        %v1101 = vrsqrt.pop %v1099
        %v1102 = vrsqrt.pop %v1100
        %v1103 = vmul.f32 %v1087, %v1101
        %v1104 = vmul.f32 %v1088, %v1102
        %v1106 = vlaneseq
        %v1107 = vshrl.u32 %v1106, 7
        %v1108 = vsub.s32 0, %v1107
        %v1109 = vrot.slane %v1075, %v1108
        %v1111 = vmul.f32 %v1103, %v1109
        %v1112 = vmul.f32 %v1104, %v1109
        %v1114 = vlaneseq
        %v1115 = vshrl.u32 %v1114, 7
        %v1116 = vsub.s32 0, %v1115
        %v1117 = vrot.slane %v1076, %v1116
        %v1119 = vadd.f32 %v1111, %v1117
        %v1120 = vadd.f32 %v1112, %v1117
        %v1121 = vpack.c.bf16 %v1120, %v1119
        %v1122 = vld [vmem:[%s10] sm:$0xff]
        %v1123 = vld [vmem:[%s10 + $0x8] sm:$0xff]
        %v1124 = vld [vmem:[%s10 + $0x10] sm:$0xff]
        %v1125 = vld [vmem:[%s10 + $0x18] sm:$0xff]
        %v1126 = vld [vmem:[%s10 + $0x20] sm:$0xff]
        %v1127 = vld [vmem:[%s10 + $0x28] sm:$0xff]
        %v1128 = vld [vmem:[%s10 + $0x30] sm:$0xff]
        %v1129 = vld [vmem:[%s10 + $0x38] sm:$0xff]
        %v1130 = vld [vmem:[%s11] sm:$0x3]
        %v1132 = vlaneseq
        %v1133 = vshrl.u32 %v1132, 7
        %v1134 = vsub.s32 0, %v1133
        %v1135 = vrot.slane %v1130, %v1134
        %v1136 = vlaneseq
        %v1137 = vshrl.u32 %v1136, 7
        %v1138 = vsub.s32 1, %v1137
        %v1139 = vrot.slane %v1130, %v1138
        %v1150 = vunpack.c.l.b16 %v1122
        %v1151 = vunpack.c.h.b16 %v1122
        %v1152 = vunpack.c.l.b16 %v1123
        %v1153 = vunpack.c.h.b16 %v1123
        %v1154 = vunpack.c.l.b16 %v1124
        %v1155 = vunpack.c.h.b16 %v1124
        %v1156 = vunpack.c.l.b16 %v1125
        %v1157 = vunpack.c.h.b16 %v1125
        %v1158 = vunpack.c.l.b16 %v1126
        %v1159 = vunpack.c.h.b16 %v1126
        %v1160 = vunpack.c.l.b16 %v1127
        %v1161 = vunpack.c.h.b16 %v1127
        %v1162 = vunpack.c.l.b16 %v1128
        %v1163 = vunpack.c.h.b16 %v1128
        %v1164 = vunpack.c.l.b16 %v1129
        %v1165 = vunpack.c.h.b16 %v1129
        %v1166 = vpack.c.b16 %v1152, %v1150
        %v1167 = vpack.c.b16 %v1153, %v1151
        %v1168 = vpack.c.b16 %v1156, %v1154
        %v1169 = vpack.c.b16 %v1157, %v1155
        %v1170 = vpack.c.b16 %v1160, %v1158
        %v1171 = vpack.c.b16 %v1161, %v1159
        %v1172 = vpack.c.b16 %v1164, %v1162
        %v1173 = vpack.c.b16 %v1165, %v1163
        %v1183 = vsel %vm1077, %v1121, 0
        %1185 = vmatprep.subr.bf16.mxu0 %v1167
        %1186 = vmatpush1.bf16.msra.mxu0 %v1166
        %1187 = vmatprep.subr.bf16.mxu0 %v1169
        %1188 = vmatpush1.bf16.msra.mxu0 %v1168
        %1189 = vmatprep.subr.bf16.mxu0 %v1171
        %1190 = vmatpush1.bf16.msra.mxu0 %v1170
        %1191 = vmatprep.subr.bf16.mxu0 %v1173
        %1192 = vmatpush1.bf16.msra.mxu0 %v1172
        %1193 = vmatprep.subr.bf16.mxu0 0
        %1194 = vmatpush1.bf16.msra.mxu0 0
        %1195 = vmatprep.subr.bf16.mxu0 0
        %1196 = vmatpush1.bf16.msra.mxu0 0
        %1197 = vmatprep.subr.bf16.mxu0 0
        %1198 = vmatpush1.bf16.msra.mxu0 0
        %1199 = vmatprep.subr.bf16.mxu0 0
        %1200 = vmatpush1.bf16.msra.mxu0 0
        %1201 = vmatprep.subr.bf16.mxu0 0
        %1202 = vmatpush1.bf16.msra.mxu0 0
        %1203 = vmatprep.subr.bf16.mxu0 0
        %1204 = vmatpush1.bf16.msra.mxu0 0
        %1205 = vmatprep.subr.bf16.mxu0 0
        %1206 = vmatpush1.bf16.msra.mxu0 0
        %1207 = vmatprep.subr.bf16.mxu0 0
        %1208 = vmatpush1.bf16.msra.mxu0 0
        %1209 = vmatprep.subr.bf16.mxu0 0
        %1210 = vmatpush1.bf16.msra.mxu0 0
        %1211 = vmatprep.subr.bf16.mxu0 0
        %1212 = vmatpush1.bf16.msra.mxu0 0
        %1213 = vmatprep.subr.bf16.mxu0 0
        %1214 = vmatpush1.bf16.msra.mxu0 0
        %1215 = vmatprep.subr.bf16.mxu0 0
        %1216 = vmatpush1.bf16.msra.mxu0 0
        %1217 = vmatprep.mubr.bf16.mxu0 0
        %1218 = vmatmul.mubr.bf16.gmra.mrb[0].mxu0 %v1183
        %v1219 = vpop.f32.mrb[0].mxu0
        %v1220 = vadd.f32 %v1135, %v1219
        %v1221 = vpop.f32.mrb[0].mxu0
        %v1222 = vadd.f32 %v1139, %v1221
        %v1223 = vpop.f32.mrb[0].mxu0
        %v1224 = vadd.f32 %v1135, %v1223
        %v1225 = vpop.f32.mrb[0].mxu0
        %v1226 = vadd.f32 %v1139, %v1225
        %1227 = vdwg.mxu0
        %v1228 = vld [vmem:[%s692] sm:$0xff]
        %v1229 = vld [vmem:[%s692 + $0x8] sm:$0xff]
        %v1230 = vld [vmem:[%s701] sm:$0xff]
        %v1231 = vld [vmem:[%s701 + $0x8] sm:$0xff]
        %v1232 = vlaneseq
        %v1233 = vand.u32 %v1232, 127
        %vm1234 = vcmask 1048064
        %1235 = vrot.lane.b32.xlu0 %v1220, 64
        %v1236 = vpop.permute.xlu0 %1235
        %v1237 = vsel %vm1234, %v1236, %v1220
        %1238 = vrot.lane.b32.xlu0 %v1224, 64
        %v1239 = vpop.permute.xlu0 %1238
        %v1240 = vsel %vm1234, %v1239, %v1224
        %1241 = vrot.lane.b32.xlu0 %v1237, 64
        %v1242 = vpop.permute.xlu0 %1241
        %1243 = vrot.lane.b32.xlu0 %v1240, 64
        %v1244 = vpop.permute.xlu0 %1243
        %v1245 = vsel %vm1234, %v1242, %v1220
        %v1246 = vsel %vm1234, %v1244, %v1224
        %vm1247 = vcmp.lt.s32.totalorder %v1233, 0
        %v1248 = vsub.s32 0, %v1233
        %v1249 = vsel %vm1247, %v1248, %v1233
        %v1250 = vshrl.u32 %v1249, 1
        %v1251 = vand.u32 %v1249, 1
        %v1252 = vsub.s32 0, %v1251
        %v1253 = vsel %vm1247, %v1252, %v1251
        %vm1254 = vcmp.ne.s32.totalorder %v1253, 0
        %vm1255 = vcmp.lt.s32.totalorder %v1253, 0
        %vm1256 = vmand %vm1255, %vm1254
        %v1257 = vadd.s32 %v1253, 2
        %v1258 = vsel %vm1256, %v1257, %v1253
        %vm1259 = vcmp.eq.s32.totalorder %v1258, 0
        %1262 = vrot.lane.b32.xlu0 %v1245, 127
        %v1263 = vpop.permute.xlu0 %1262
        %1264 = vrot.lane.b32.xlu0 %v1246, 127
        %v1265 = vpop.permute.xlu0 %1264
        %1268 = vrot.lane.b32.xlu0 %v1245, 65
        %v1269 = vpop.permute.xlu0 %1268
        %1270 = vrot.lane.b32.xlu0 %v1246, 65
        %v1271 = vpop.permute.xlu0 %1270
        %v1274 = vsel %vm1259, %v1263, %v1269
        %v1275 = vsel %vm1259, %v1265, %v1271
        %v1276 = vmul.f32 %v1220, %v1228
        %v1277 = vmul.f32 %v1224, %v1229
        %v1278 = vmul.f32 %v1274, %v1230
        %v1279 = vmul.f32 %v1275, %v1231
        %v1280 = vadd.f32 %v1276, %v1278
        %v1281 = vadd.f32 %v1277, %v1279
        %v1282 = vpack.c.bf16 %v1281, %v1280
        %v1283 = vpack.c.bf16 %v1224, %v1220
        %v1284 = vpack.c.bf16 %v1226, %v1222
        %v1285 = vld [vmem:[#allocation2] sm:$0xff]
        %vm1286 = vcmask 261120
        %v1288 = vsel %vm1286, %v1285, 0
        %v1291 = vsel %vm1286, %v1282, 0
        %1293 = vmatprep.subr.bf16.mxu0 0
        %1294 = vmatpush1.bf16.xpose.msra.mxu0 %v1291
        %1295 = vmatprep.subr.bf16.mxu0 0
        %1296 = vmatpush1.bf16.xpose.msra.mxu0 0
        %1297 = vmatprep.subr.bf16.mxu0 0
        %1298 = vmatpush1.bf16.xpose.msra.mxu0 0
        %1299 = vmatprep.subr.bf16.mxu0 0
        %1300 = vmatpush1.bf16.xpose.msra.mxu0 0
        %1301 = vmatprep.subr.bf16.mxu0 0
        %1302 = vmatpush1.bf16.xpose.msra.mxu0 0
        %1303 = vmatprep.subr.bf16.mxu0 0
        %1304 = vmatpush1.bf16.xpose.msra.mxu0 0
        %1305 = vmatprep.subr.bf16.mxu0 0
        %1306 = vmatpush1.bf16.xpose.msra.mxu0 0
        %1307 = vmatprep.subr.bf16.mxu0 0
        %1308 = vmatpush1.bf16.xpose.msra.mxu0 0
        %1309 = vmatprep.subr.bf16.mxu0 0
        %1310 = vmatpush1.bf16.xpose.msra.mxu0 0
        %1311 = vmatprep.subr.bf16.mxu0 0
        %1312 = vmatpush1.bf16.xpose.msra.mxu0 0
        %1313 = vmatprep.subr.bf16.mxu0 0
        %1314 = vmatpush1.bf16.xpose.msra.mxu0 0
        %1315 = vmatprep.subr.bf16.mxu0 0
        %1316 = vmatpush1.bf16.xpose.msra.mxu0 0
        %1317 = vmatprep.subr.bf16.mxu0 0
        %1318 = vmatpush1.bf16.xpose.msra.mxu0 0
        %1319 = vmatprep.subr.bf16.mxu0 0
        %1320 = vmatpush1.bf16.xpose.msra.mxu0 0
        %1321 = vmatprep.subr.bf16.mxu0 0
        %1322 = vmatpush1.bf16.xpose.msra.mxu0 0
        %1323 = vmatprep.subr.bf16.mxu0 0
        %1324 = vmatpush1.bf16.xpose.msra.mxu0 0
        %1325 = vmatprep.mubr.bf16.mxu0 0
        %1326 = vmatmul.mubr.bf16.gmra.mrb[0].mxu0 %v1288
        %v1327 = vpop.f32.mrb[0].mxu0
        %v1328 = vadd.f32 0.0, %v1327
        %v1329 = vpop.f32.mrb[0].mxu0
        %v1330 = vpop.f32.mrb[0].mxu0
        %v1331 = vadd.f32 0.0, %v1330
        %v1332 = vpop.f32.mrb[0].mxu0
        %1333 = vdwg.mxu0
        %v1334 = vld [vmem:[#allocation4] sm:$0xff]
        %v1335 = vld [vmem:[#allocation4 + $0x8] sm:$0xff]
        %v1336 = vpack.c.bf16 %v1331, %v1328
        %1338 = vrot.lane.b32.xlu0 %v1283, 64
        %v1339 = vpop.permute.xlu0 %1338
        %vm1341 = vcmask 130048
        %v1343 = vsel %vm1341, %v1336, 0
        %1345 = vmatprep.subr.bf16.mxu0 0
        %1346 = vmatpush1.bf16.msra.mxu0 %v1339
        %1347 = vmatprep.subr.bf16.mxu0 0
        %1348 = vmatpush1.bf16.msra.mxu0 0
        %1349 = vmatprep.subr.bf16.mxu0 0
        %1350 = vmatpush1.bf16.msra.mxu0 0
        %1351 = vmatprep.subr.bf16.mxu0 0
        %1352 = vmatpush1.bf16.msra.mxu0 0
        %1353 = vmatprep.subr.bf16.mxu0 0
        %1354 = vmatpush1.bf16.msra.mxu0 0
        %1355 = vmatprep.subr.bf16.mxu0 0
        %1356 = vmatpush1.bf16.msra.mxu0 0
        %1357 = vmatprep.subr.bf16.mxu0 0
        %1358 = vmatpush1.bf16.msra.mxu0 0
        %1359 = vmatprep.subr.bf16.mxu0 0
        %1360 = vmatpush1.bf16.msra.mxu0 0
        %1361 = vmatprep.subr.bf16.mxu0 0
        %1362 = vmatpush1.bf16.msra.mxu0 0
        %1363 = vmatprep.subr.bf16.mxu0 0
        %1364 = vmatpush1.bf16.msra.mxu0 0
        %1365 = vmatprep.subr.bf16.mxu0 0
        %1366 = vmatpush1.bf16.msra.mxu0 0
        %1367 = vmatprep.subr.bf16.mxu0 0
        %1368 = vmatpush1.bf16.msra.mxu0 0
        %1369 = vmatprep.subr.bf16.mxu0 0
        %1370 = vmatpush1.bf16.msra.mxu0 0
        %1371 = vmatprep.subr.bf16.mxu0 0
        %1372 = vmatpush1.bf16.msra.mxu0 0
        %1373 = vmatprep.subr.bf16.mxu0 0
        %1374 = vmatpush1.bf16.msra.mxu0 0
        %1375 = vmatprep.subr.bf16.mxu0 0
        %1376 = vmatpush1.bf16.msra.mxu0 0
        %1377 = vmatprep.mubr.bf16.mxu0 0
        %1378 = vmatmul.mubr.bf16.gmra.mrb[0].mxu0 %v1343
        %v1379 = vpop.f32.mrb[0].mxu0
        %v1380 = vadd.f32 0.0, %v1379
        %v1381 = vpop.f32.mrb[0].mxu0
        %v1382 = vpop.f32.mrb[0].mxu0
        %v1383 = vadd.f32 0.0, %v1382
        %v1384 = vpop.f32.mrb[0].mxu0
        %1385 = vdwg.mxu0
        %v1386 = vadd.f32 %v1334, %v1380
        %v1387 = vadd.f32 %v1335, %v1383
        %1388 = vst.msk [vmem:[#allocation4] sm:$0xff] %vm1077, %v1386
        %1389 = vst.msk [vmem:[#allocation4 + $0x8] sm:$0xff] %vm1077, %v1387
        %1391 = vrot.lane.b32.xlu0 %v1285, 96
        %v1392 = vpop.permute.xlu0 %1391
        %1394 = vrot.lane.b32.xlu0 %v1282, 96
        %v1395 = vpop.permute.xlu0 %1394
        %v1397 = vsel %vm1286, %v1392, 0
        %v1400 = vsel %vm1286, %v1395, 0
        %1402 = vmatprep.subr.bf16.mxu0 0
        %1403 = vmatpush1.bf16.xpose.msra.mxu0 %v1400
        %1404 = vmatprep.subr.bf16.mxu0 0
        %1405 = vmatpush1.bf16.xpose.msra.mxu0 0
        %1406 = vmatprep.subr.bf16.mxu0 0
        %1407 = vmatpush1.bf16.xpose.msra.mxu0 0
        %1408 = vmatprep.subr.bf16.mxu0 0
        %1409 = vmatpush1.bf16.xpose.msra.mxu0 0
        %1410 = vmatprep.subr.bf16.mxu0 0
        %1411 = vmatpush1.bf16.xpose.msra.mxu0 0
        %1412 = vmatprep.subr.bf16.mxu0 0
        %1413 = vmatpush1.bf16.xpose.msra.mxu0 0
        %1414 = vmatprep.subr.bf16.mxu0 0
        %1415 = vmatpush1.bf16.xpose.msra.mxu0 0
        %1416 = vmatprep.subr.bf16.mxu0 0
        %1417 = vmatpush1.bf16.xpose.msra.mxu0 0
        %1418 = vmatprep.subr.bf16.mxu0 0
        %1419 = vmatpush1.bf16.xpose.msra.mxu0 0
        %1420 = vmatprep.subr.bf16.mxu0 0
        %1421 = vmatpush1.bf16.xpose.msra.mxu0 0
        %1422 = vmatprep.subr.bf16.mxu0 0
        %1423 = vmatpush1.bf16.xpose.msra.mxu0 0
        %1424 = vmatprep.subr.bf16.mxu0 0
        %1425 = vmatpush1.bf16.xpose.msra.mxu0 0
        %1426 = vmatprep.subr.bf16.mxu0 0
        %1427 = vmatpush1.bf16.xpose.msra.mxu0 0
        %1428 = vmatprep.subr.bf16.mxu0 0
        %1429 = vmatpush1.bf16.xpose.msra.mxu0 0
        %1430 = vmatprep.subr.bf16.mxu0 0
        %1431 = vmatpush1.bf16.xpose.msra.mxu0 0
        %1432 = vmatprep.subr.bf16.mxu0 0
        %1433 = vmatpush1.bf16.xpose.msra.mxu0 0
        %1434 = vmatprep.mubr.bf16.mxu0 0
        %1435 = vmatmul.mubr.bf16.gmra.mrb[0].mxu0 %v1397
        %v1436 = vpop.f32.mrb[0].mxu0
        %v1437 = vadd.f32 0.0, %v1436
        %v1438 = vpop.f32.mrb[0].mxu0
        %v1439 = vpop.f32.mrb[0].mxu0
        %v1440 = vadd.f32 0.0, %v1439
        %v1441 = vpop.f32.mrb[0].mxu0
        %1442 = vdwg.mxu0
        %v1443 = vld [vmem:[#allocation4] sm:$0xff]
        %v1444 = vld [vmem:[#allocation4 + $0x8] sm:$0xff]
        %v1445 = vpack.c.bf16 %v1440, %v1437
        %v1447 = vsel %vm1341, %v1445, 0
        %1449 = vmatprep.subr.bf16.mxu0 0
        %1450 = vmatpush1.bf16.msra.mxu0 %v1284
        %1451 = vmatprep.subr.bf16.mxu0 0
        %1452 = vmatpush1.bf16.msra.mxu0 0
        %1453 = vmatprep.subr.bf16.mxu0 0
        %1454 = vmatpush1.bf16.msra.mxu0 0
        %1455 = vmatprep.subr.bf16.mxu0 0
        %1456 = vmatpush1.bf16.msra.mxu0 0
        %1457 = vmatprep.subr.bf16.mxu0 0
        %1458 = vmatpush1.bf16.msra.mxu0 0
        %1459 = vmatprep.subr.bf16.mxu0 0
        %1460 = vmatpush1.bf16.msra.mxu0 0
        %1461 = vmatprep.subr.bf16.mxu0 0
        %1462 = vmatpush1.bf16.msra.mxu0 0
        %1463 = vmatprep.subr.bf16.mxu0 0
        %1464 = vmatpush1.bf16.msra.mxu0 0
        %1465 = vmatprep.subr.bf16.mxu0 0
        %1466 = vmatpush1.bf16.msra.mxu0 0
        %1467 = vmatprep.subr.bf16.mxu0 0
        %1468 = vmatpush1.bf16.msra.mxu0 0
        %1469 = vmatprep.subr.bf16.mxu0 0
        %1470 = vmatpush1.bf16.msra.mxu0 0
        %1471 = vmatprep.subr.bf16.mxu0 0
        %1472 = vmatpush1.bf16.msra.mxu0 0
        %1473 = vmatprep.subr.bf16.mxu0 0
        %1474 = vmatpush1.bf16.msra.mxu0 0
        %1475 = vmatprep.subr.bf16.mxu0 0
        %1476 = vmatpush1.bf16.msra.mxu0 0
        %1477 = vmatprep.subr.bf16.mxu0 0
        %1478 = vmatpush1.bf16.msra.mxu0 0
        %1479 = vmatprep.subr.bf16.mxu0 0
        %1480 = vmatpush1.bf16.msra.mxu0 0
        %1481 = vmatprep.mubr.bf16.mxu0 0
        %1482 = vmatmul.mubr.bf16.gmra.mrb[0].mxu0 %v1447
        %v1483 = vpop.f32.mrb[0].mxu0
        %v1484 = vadd.f32 0.0, %v1483
        %v1485 = vpop.f32.mrb[0].mxu0
        %v1486 = vpop.f32.mrb[0].mxu0
        %v1487 = vadd.f32 0.0, %v1486
        %v1488 = vpop.f32.mrb[0].mxu0
        %1489 = vdwg.mxu0
        %1492 = vrot.lane.b32.xlu0 %v1484, 64
        %v1493 = vpop.permute.xlu0 %1492
        %1494 = vrot.lane.b32.xlu0 %v1487, 64
        %v1495 = vpop.permute.xlu0 %1494
        %v1498 = vadd.f32 %v1443, %v1493
        %v1499 = vadd.f32 %v1444, %v1495
        %1500 = vst.msk [vmem:[#allocation4] sm:$0xff] %vm1234, %v1498
        %1501 = vst.msk [vmem:[#allocation4 + $0x8] sm:$0xff] %vm1234, %v1499
        %p1502 = scmp.eq.s32.totalorder %s48, 1
        // Predicated region
        $region121: #{tpu_custom_call.1} parent=83 // pred_check
          %p1503 = pneg %p1502
        $region122: #{tpu_custom_call.1} parent=83 // pred_check_branch
          %1505 = sbr.rel (%p1503) target = $region124
        $region123: #{tpu_custom_call.1} parent=83 // pred_region
          %v1506 = vld [vmem:[%s14] sm:$0x1]
          %v1507 = vld [vmem:[%s15] sm:$0x1]
          %v1508 = vld [vmem:[#allocation3] sm:$0xff]
          %v1509 = vld [vmem:[#allocation3 + $0x8] sm:$0xff]
          %v1510 = vld [vmem:[#allocation4] sm:$0xff]
          %v1511 = vld [vmem:[#allocation4 + $0x8] sm:$0xff]
          %v1512 = vsel %vm1077, %v1510, 0.0
          %1513 = vadd.xlane.f32.xlu0 %v1512
          %v1514 = vpop.xlane.xlu0 %1513
          %v1515 = vsel %vm1077, %v1511, 0.0
          %1516 = vadd.xlane.f32.xlu0 %v1515
          %v1517 = vpop.xlane.xlu0 %1516
          %v1518 = vmul.f32 %v1514, %v1084
          %v1519 = vmul.f32 %v1517, %v1084
          %v1520 = vsub.f32 %v1510, %v1518
          %v1521 = vsub.f32 %v1511, %v1519
          %v1522 = vmul.f32 %v1520, %v1520
          %v1523 = vmul.f32 %v1521, %v1521
          %v1524 = vsel %vm1077, %v1522, 0.0
          %1525 = vadd.xlane.f32.xlu0 %v1524
          %v1526 = vpop.xlane.xlu0 %1525
          %v1527 = vsel %vm1077, %v1523, 0.0
          %1528 = vadd.xlane.f32.xlu0 %v1527
          %v1529 = vpop.xlane.xlu0 %1528
          %v1530 = vmul.f32 %v1526, %v1084
          %v1531 = vmul.f32 %v1529, %v1084
          %v1532 = vadd.f32 %v1530, 1e-05
          %v1533 = vadd.f32 %v1531, 1e-05
          %v1534 = vrsqrt.pop %v1532
          %v1535 = vrsqrt.pop %v1533
          %v1536 = vmul.f32 %v1520, %v1534
          %v1537 = vmul.f32 %v1521, %v1535
          %v1539 = vlaneseq
          %v1540 = vshrl.u32 %v1539, 7
          %v1541 = vsub.s32 0, %v1540
          %v1542 = vrot.slane %v1506, %v1541
          %v1544 = vmul.f32 %v1536, %v1542
          %v1545 = vmul.f32 %v1537, %v1542
          %v1547 = vlaneseq
          %v1548 = vshrl.u32 %v1547, 7
          %v1549 = vsub.s32 0, %v1548
          %v1550 = vrot.slane %v1507, %v1549
          %v1552 = vadd.f32 %v1544, %v1550
          %v1553 = vadd.f32 %v1545, %v1550
          %v1554 = vmul.f32 %v1508, %v1552
          %v1555 = vmul.f32 %v1509, %v1553
          %1556 = vst.msk [vmem:[#allocation3] sm:$0xff] %vm1077, %v1554
          %1557 = vst.msk [vmem:[#allocation3 + $0x8] sm:$0xff] %vm1077, %v1555
          %v1558 = vld [vmem:[#allocation3] sm:$0xff]
          %v1559 = vld [vmem:[#allocation3 + $0x8] sm:$0xff]
          %v1560 = vld [vmem:[#allocation4] sm:$0xff]
          %v1561 = vld [vmem:[#allocation4 + $0x8] sm:$0xff]
          %1564 = vrot.lane.b32.xlu0 %v1560, 64
          %v1565 = vpop.permute.xlu0 %1564
          %1566 = vrot.lane.b32.xlu0 %v1561, 64
          %v1567 = vpop.permute.xlu0 %1566
          %v1570 = vsel %vm1077, %v1565, 0.0
          %1571 = vadd.xlane.f32.xlu0 %v1570
          %v1572 = vpop.xlane.xlu0 %1571
          %v1573 = vsel %vm1077, %v1567, 0.0
          %1574 = vadd.xlane.f32.xlu0 %v1573
          %v1575 = vpop.xlane.xlu0 %1574
          %v1576 = vmul.f32 %v1572, %v1084
          %v1577 = vmul.f32 %v1575, %v1084
          %v1578 = vsub.f32 %v1560, %v1576
          %v1579 = vsub.f32 %v1561, %v1577
          %v1580 = vmul.f32 %v1578, %v1578
          %v1581 = vmul.f32 %v1579, %v1579
          %1584 = vrot.lane.b32.xlu0 %v1580, 64
          %v1585 = vpop.permute.xlu0 %1584
          %1586 = vrot.lane.b32.xlu0 %v1581, 64
          %v1587 = vpop.permute.xlu0 %1586
          %v1590 = vsel %vm1077, %v1585, 0.0
          %1591 = vadd.xlane.f32.xlu0 %v1590
          %v1592 = vpop.xlane.xlu0 %1591
          %v1593 = vsel %vm1077, %v1587, 0.0
          %1594 = vadd.xlane.f32.xlu0 %v1593
          %v1595 = vpop.xlane.xlu0 %1594
          %v1596 = vmul.f32 %v1592, %v1084
          %v1597 = vmul.f32 %v1595, %v1084
          %v1598 = vadd.f32 %v1596, 1e-05
          %v1599 = vadd.f32 %v1597, 1e-05
          %v1600 = vrsqrt.pop %v1598
          %v1601 = vrsqrt.pop %v1599
          %v1602 = vmul.f32 %v1578, %v1600
          %v1603 = vmul.f32 %v1579, %v1601
          %1604 = vrot.lane.b32.xlu0 %v1542, 64
          %v1605 = vpop.permute.xlu0 %1604
          %v1607 = vmul.f32 %v1602, %v1605
          %v1608 = vmul.f32 %v1603, %v1605
          %1609 = vrot.lane.b32.xlu0 %v1550, 64
          %v1610 = vpop.permute.xlu0 %1609
          %v1612 = vadd.f32 %v1607, %v1610
          %v1613 = vadd.f32 %v1608, %v1610
          %v1614 = vmul.f32 %v1558, %v1612
          %v1615 = vmul.f32 %v1559, %v1613
          %1616 = vst.msk [vmem:[#allocation3] sm:$0xff] %vm1234, %v1614
          %1617 = vst.msk [vmem:[#allocation3 + $0x8] sm:$0xff] %vm1234, %v1615
          %v1618 = vld [vmem:[#allocation3] sm:$0xff]
          %v1619 = vld [vmem:[#allocation3 + $0x8] sm:$0xff]
          %v1620 = vpack.c.bf16 %v1619, %v1618
          %v1621 = vld [vmem:[%s12] sm:$0xf]
          %v1622 = vld [vmem:[%s12 + $0x4] sm:$0xf]
          %v1623 = vld [vmem:[%s12 + $0x8] sm:$0xf]
          %v1624 = vld [vmem:[%s12 + $0xc] sm:$0xf]
          %v1625 = vld [vmem:[%s12 + $0x10] sm:$0xf]
          %v1626 = vld [vmem:[%s12 + $0x14] sm:$0xf]
          %v1627 = vld [vmem:[%s12 + $0x18] sm:$0xf]
          %v1628 = vld [vmem:[%s12 + $0x1c] sm:$0xf]
          %v1629 = vld [vmem:[%s12 + $0x20] sm:$0xf]
          %v1630 = vld [vmem:[%s12 + $0x24] sm:$0xf]
          %v1631 = vld [vmem:[%s12 + $0x28] sm:$0xf]
          %v1632 = vld [vmem:[%s12 + $0x2c] sm:$0xf]
          %v1633 = vld [vmem:[%s12 + $0x30] sm:$0xf]
          %v1634 = vld [vmem:[%s12 + $0x34] sm:$0xf]
          %v1635 = vld [vmem:[%s12 + $0x38] sm:$0xf]
          %v1636 = vld [vmem:[%s12 + $0x3c] sm:$0xf]
          %v1637 = vld [vmem:[%s13] sm:$0x1]
          %v1639 = vlaneseq
          %v1640 = vshrl.u32 %v1639, 7
          %v1641 = vsub.s32 0, %v1640
          %v1642 = vrot.slane %v1637, %v1641
          %v1660 = vunpack.c.l.b16 %v1621
          %v1661 = vunpack.c.l.b16 %v1622
          %v1662 = vunpack.c.l.b16 %v1623
          %v1663 = vunpack.c.l.b16 %v1624
          %v1664 = vunpack.c.l.b16 %v1625
          %v1665 = vunpack.c.l.b16 %v1626
          %v1666 = vunpack.c.l.b16 %v1627
          %v1667 = vunpack.c.l.b16 %v1628
          %v1668 = vunpack.c.l.b16 %v1629
          %v1669 = vunpack.c.l.b16 %v1630
          %v1670 = vunpack.c.l.b16 %v1631
          %v1671 = vunpack.c.l.b16 %v1632
          %v1672 = vunpack.c.l.b16 %v1633
          %v1673 = vunpack.c.l.b16 %v1634
          %v1674 = vunpack.c.l.b16 %v1635
          %v1675 = vunpack.c.l.b16 %v1636
          %v1676 = vpack.c.b16 %v1661, %v1660
          %v1677 = vpack.c.b16 %v1663, %v1662
          %v1678 = vpack.c.b16 %v1665, %v1664
          %v1679 = vpack.c.b16 %v1667, %v1666
          %v1680 = vpack.c.b16 %v1669, %v1668
          %v1681 = vpack.c.b16 %v1671, %v1670
          %v1682 = vpack.c.b16 %v1673, %v1672
          %v1683 = vpack.c.b16 %v1675, %v1674
          %1692 = vmatprep.subr.bf16.mxu0 0
          %1693 = vmatpush1.bf16.msra.mxu0 %v1676
          %1694 = vmatprep.subr.bf16.mxu0 0
          %1695 = vmatpush1.bf16.msra.mxu0 %v1677
          %1696 = vmatprep.subr.bf16.mxu0 0
          %1697 = vmatpush1.bf16.msra.mxu0 %v1678
          %1698 = vmatprep.subr.bf16.mxu0 0
          %1699 = vmatpush1.bf16.msra.mxu0 %v1679
          %1700 = vmatprep.subr.bf16.mxu0 0
          %1701 = vmatpush1.bf16.msra.mxu0 %v1680
          %1702 = vmatprep.subr.bf16.mxu0 0
          %1703 = vmatpush1.bf16.msra.mxu0 %v1681
          %1704 = vmatprep.subr.bf16.mxu0 0
          %1705 = vmatpush1.bf16.msra.mxu0 %v1682
          %1706 = vmatprep.subr.bf16.mxu0 0
          %1707 = vmatpush1.bf16.msra.mxu0 %v1683
          %1708 = vmatprep.subr.bf16.mxu0 0
          %1709 = vmatpush1.bf16.msra.mxu0 0
          %1710 = vmatprep.subr.bf16.mxu0 0
          %1711 = vmatpush1.bf16.msra.mxu0 0
          %1712 = vmatprep.subr.bf16.mxu0 0
          %1713 = vmatpush1.bf16.msra.mxu0 0
          %1714 = vmatprep.subr.bf16.mxu0 0
          %1715 = vmatpush1.bf16.msra.mxu0 0
          %1716 = vmatprep.subr.bf16.mxu0 0
          %1717 = vmatpush1.bf16.msra.mxu0 0
          %1718 = vmatprep.subr.bf16.mxu0 0
          %1719 = vmatpush1.bf16.msra.mxu0 0
          %1720 = vmatprep.subr.bf16.mxu0 0
          %1721 = vmatpush1.bf16.msra.mxu0 0
          %1722 = vmatprep.subr.bf16.mxu0 0
          %1723 = vmatpush1.bf16.msra.mxu0 0
          %1724 = vmatprep.mubr.bf16.mxu0 0
          %1725 = vmatmul.mubr.bf16.gmra.mrb[0].mxu0 %v1620
          %v1726 = vpop.f32.mrb[0].mxu0
          %v1727 = vadd.f32 %v1642, %v1726
          %v1728 = vpop.f32.mrb[0].mxu0
          %v1729 = vpop.f32.mrb[0].mxu0
          %v1730 = vadd.f32 %v1642, %v1729
          %v1731 = vpop.f32.mrb[0].mxu0
          %1732 = vdwg.mxu0
          %1733 = vst.msk [vmem:[%s788] sm:$0xff] %vm1077, %v1727
          %1734 = vst.msk [vmem:[%s788 + $0x8] sm:$0xff] %vm1077, %v1730
        $region124: #{tpu_custom_call.1} parent=83 // pred_fallthru
          _
        %s1735 = sand.u32 %s446, 1
        %s1736 = scalar_lea.sflag [#allocation7], %s1735
        %s1737 = sand.u32 %s446, 1
        %s1738 = smul.addr %s1737, 16
        %s1739 = scalar_lea.vmem [#allocation19], %s1738
        // Predicated region
        $region125: #{tpu_custom_call.1} parent=83 // pred_check
          %p1740 = pneg %p456
        $region126: #{tpu_custom_call.1} parent=83 // pred_check_branch
          %1742 = sbr.rel (%p1740) target = $region128
        $region127: #{tpu_custom_call.1} parent=83 // pred_region
          %s1743 = smul.u32 %s46, 2
          %s1744 = sadd.s32 %s1743, %s47
          %s1745 = smul.u32 2, %s1744
          %s1747 = ssub.s32 256, 256
          %1748 = vsyncadd %s1736, %s1747
          %s1749 = smul.addr %s1745, 128
          %s1750 = scalar_lea.hbm %s16, %s1749
          %s1751 = sshll.u32 %s1739, 4
          %s1752 = int_to_ptr.vmem [resolvable:$true] %s1751
          %1757 = dma.vmem_to_hbm [thread:$0]  %s1752, 256, %s1750, %s1736, 128, 128, 8
        $region128: #{tpu_custom_call.1} parent=83 // pred_fallthru
          _
      $region84: #{tpu_custom_call.1} parent=5 // pred_fallthru
        _
      %p1758 = scmp.le.s32.totalorder 2, %s36
      // Predicated region
      $region129: #{tpu_custom_call.1} parent=5 // pred_check
        %p1759 = pneg %p1758
      $region130: #{tpu_custom_call.1} parent=5 // pred_check_branch
        %1761 = sbr.rel (%p1759) target = $region132
      $region131: #{tpu_custom_call.1} parent=5 // pred_region
        %s1762 = ssub.s32 %s36, 2
        // Predicated region
        $region133: #{tpu_custom_call.1} parent=131 // pred_check
          %p1763 = pneg %p462
        $region134: #{tpu_custom_call.1} parent=131 // pred_check_branch
          %1765 = sbr.rel (%p1763) target = $region136
        $region135: #{tpu_custom_call.1} parent=131 // pred_region
          %s1766 = sand.u32 %s447, 1
          %s1767 = scalar_lea.sflag [#allocation7], %s1766
          %s1768 = sand.u32 %s447, 1
          %s1769 = smul.addr %s1768, 16
          %s1770 = scalar_lea.vmem [#allocation19], %s1769
          %1771 = dma.done %s1767, 256
        $region136: #{tpu_custom_call.1} parent=131 // pred_fallthru
          _
      $region132: #{tpu_custom_call.1} parent=5 // pred_fallthru
        _
    $region6: #{tpu_custom_call.1} parent=1 // loop_footer
      %s40 = sadd.s32 1, %s36
    $region7: #{tpu_custom_call.1} parent=1 // loop_footer_branch
      %35 = sbr.rel target = $region3
    $region8: #{tpu_custom_call.1} parent=1 // loop_exit
      _
    %1772 = vsyncpa [#allocation6], 1
    %s1773 = scalar_lea.sflag [#allocation6], 1
    %1774 = vsyncpa %s1773, 1
    %1775 = vsyncpa [#allocation9], 1
    %s1776 = scalar_lea.sflag [#allocation9], 1
    %1777 = vsyncpa %s1776, 1
    %1778 = vsyncpa [#allocation12], 1
    %s1779 = scalar_lea.sflag [#allocation12], 1
    %1780 = vsyncpa %s1779, 1
    %1781 = vsyncpa [#allocation15], 1
    %1782 = vsyncpa [#allocation18], 1
    %1783 = vsyncpa [#allocation7], 1
    %s1784 = scalar_lea.sflag [#allocation7], 1
    %1785 = vsyncpa %s1784, 1

</llo_original>
